<compile_context>
chip_gen: v5e
topology: v5e:2x2
jax: 0.10.0
libtpu: 0.0.40
codegen_flags: <defaults>
</compile_context>

<pallas_src>
import functools

import jax
import jax.numpy as jnp
from jax import lax
from jax.experimental import pallas as pl
from jax.experimental.pallas import tpu as pltpu


def _round_up(x, m):
    return ((x + m - 1) // m) * m


def _conv_bn_relu_kernel(x_ref, w_ref, b_ref, o_ref, *, taps, rows_out, n_k,
                         has_relu):
    """One (image, Cout-tile) output slab; Cin reduction over grid axis 2.

    x_ref: [P, rows_in, tc]  phase-split, spatially flattened activation
    w_ref: [T, tc, tn]       per-tap weights (BN scale folded in)
    b_ref: [1, tn]           folded BN bias (f32)
    o_ref: [rows_out, tn]    f32 output slab, resident across the Cin axis
    """
    # In-kernel tap gather: each tap is a static contiguous row window of the
    # flattened activation slab (dh * Ws + dw offset), fed straight to the MXU.
    acc = None
    for t, (p, off) in enumerate(taps):
        a = x_ref[p, pl.ds(off, rows_out), :]
        prod = jnp.dot(a, w_ref[t], preferred_element_type=jnp.float32)
        acc = prod if acc is None else acc + prod

    def epilogue(y):
        y = y + b_ref[...]
        if has_relu:
            y = jnp.maximum(y, 0.0)
        return y.astype(o_ref.dtype)

    if n_k == 1:
        # Common case: single Cin tile -> no accumulator read-modify-write.
        o_ref[...] = epilogue(acc)
    else:
        k = pl.program_id(2)

        @pl.when(k == 0)
        def _():
            o_ref[...] = acc            # write first product, no zero-fill pass

        @pl.when(k > 0)
        def _():
            o_ref[...] += acc

        @pl.when(k == n_k - 1)
        def _():
            o_ref[...] = epilogue(o_ref[...])


def conv_bn_relu(x_nchw, weight_oihw, bn_gamma=None, bn_beta=None,
                 bn_mean=None, bn_var=None, conv_bias=None, *,
                 stride=1, pad=0, dilation=1, groups=1, eps=1e-5,
                 has_bn=True, has_relu=True,
                 compute_dtype=jnp.bfloat16):
    """Fused Conv2d + BatchNorm2d(eval) + ReLU.

    x_nchw:      [N, Cin, H, W]        (PyTorch layout)
    weight_oihw: [Cout, Cin, KH, KW]   (PyTorch layout, groups=1)
    returns:     [N, Cout, Ho, Wo]     float32

    compute_dtype=bfloat16 (default) uses the bf16-native MXU on all TPU
    generations (incl. v5e) with f32 accumulation; pass jnp.float32 for exact
    PyTorch-f32 conv numerics.
    """
    assert groups == 1, "groups != 1 not supported"  # TODO(synk): grouped conv

    N, Cin, H, W = x_nchw.shape
    Cout, Cin_w, KH, KW = weight_oihw.shape
    assert Cin_w == Cin
    s, d = stride, dilation
    T = KH * KW
    itemsize = jnp.dtype(compute_dtype).itemsize

    Ho = (H + 2 * pad - d * (KH - 1) - 1) // s + 1
    Wo = (W + 2 * pad - d * (KW - 1) - 1) // s + 1

    LANE = 128
    Cin_pad = _round_up(Cin, LANE)
    Cout_pad = _round_up(Cout, LANE)
    if Cout_pad >= 256:                     # full-width tiles for 256-wide MXU
        Cout_pad = _round_up(Cout_pad, 256)

    # --------------------------- BN folding (inference) ---------------------
    if has_bn:
        inv_std = lax.rsqrt(bn_var.astype(jnp.float32) + eps)
        scale = bn_gamma.astype(jnp.float32) * inv_std
        shift = bn_beta.astype(jnp.float32) - bn_mean.astype(jnp.float32) * scale
    else:
        scale = jnp.ones((Cout,), jnp.float32)
        shift = jnp.zeros((Cout,), jnp.float32)
    if conv_bias is not None:
        shift = shift + conv_bias.astype(jnp.float32) * scale

    # Weights: [Cout,Cin,KH,KW] -> [T, Cin, Cout]; fold BN scale in f32, then
    # cast to the compute dtype and pad channels.
    w = jnp.transpose(weight_oihw.astype(jnp.float32), (2, 3, 1, 0))
    w = w.reshape(T, Cin, Cout) * scale[None, None, :]
    w = w.astype(compute_dtype)
    w = jnp.pad(w, ((0, 0), (0, Cin_pad - Cin), (0, Cout_pad - Cout)))
    bias = jnp.pad(shift, (0, Cout_pad - Cout)).reshape(1, Cout_pad)

    # ----------------- Activation: NHWC, cast early, pad, phase-split -------
    x = jnp.transpose(x_nchw, (0, 2, 3, 1)).astype(compute_dtype)   # cast BEFORE expansion
    H_pad = _round_up(H + 2 * pad, s)
    W_pad = _round_up(W + 2 * pad, s)
    x = jnp.pad(x, ((0, 0), (pad, H_pad - H - pad), (pad, W_pad - W - pad), (0, 0)))
    Hs, Ws = H_pad // s, W_pad // s

    # Static tap table: (phase index, flattened row offset) per (kh, kw).
    taps, dh_max, dw_max = [], 0, 0
    for kh in range(KH):
        for kw in range(KW):
            ih, iw = kh * d, kw * d
            ph, pw_ = ih % s, iw % s
            dh, dw = ih // s, iw // s
            dh_max, dw_max = max(dh_max, dh), max(dw_max, dw)
            taps.append((ph * s + pw_, dh * Ws + dw))
    used = sorted({p for p, _ in taps})
    remap = {p: i for i, p in enumerate(used)}
    taps = tuple((remap[p], off) for p, off in taps)
    P = len(used)

    if s > 1:
        xp = x.reshape(N, Hs, s, Ws, s, Cin)
        xp = jnp.transpose(xp, (2, 4, 0, 1, 3, 5)).reshape(s * s, N, Hs, Ws, Cin)
        if P < s * s:           # drop phases no tap reads (e.g. dilation % stride == 0)
            xp = jnp.take(xp, jnp.asarray(used, jnp.int32), axis=0)
    else:
        xp = x[None]

    rows_out = Ho * Ws                        # output rows incl. width-halo garbage cols
    rows_in = max(Hs * Ws, dh_max * Ws + dw_max + rows_out)
    xp = xp.reshape(P, N, Hs * Ws, Cin)
    xp = jnp.pad(xp, ((0, 0), (0, 0), (0, rows_in - Hs * Ws), (0, Cin_pad - Cin)))

    # ------------------------------ tile selection ---------------------------
    tc = max(t for t in (512, 256, 128) if Cin_pad % t == 0)
    tn = Cout_pad if Cout_pad <= 1024 else \
        max(t for t in (1024, 512, 256) if Cout_pad % t == 0)

    def footprint(tc_, tn_):   # double-buffered inputs + f32 output block
        return (2 * (P * rows_in * tc_ + T * tc_ * tn_) * itemsize
                + 2 * rows_out * tn_ * 4 + 2 * tn_ * 4)

    budget = 24 * 1024 * 1024    # stay well inside v7x's 32 MiB scoped VMEM
    while footprint(tc, tn) > budget and tn % 256 == 0 and Cout_pad % (tn // 2) == 0:
        tn //= 2
    while footprint(tc, tn) > budget and tc % 256 == 0:
        tc //= 2
    # v7x megacore: make sure the parallel axes (n, j) hold >= 2 tiles.
    if N * (Cout_pad // tn) < 2 and tn % 256 == 0 and Cout_pad % (tn // 2) == 0:
        tn //= 2

    n_j = Cout_pad // tn
    n_k = Cin_pad // tc
    grid = (N, n_j, n_k)

    kernel = functools.partial(_conv_bn_relu_kernel, taps=taps, rows_out=rows_out,
                               n_k=n_k, has_relu=has_relu)
    cost = pl.CostEstimate(
        flops=2 * N * rows_out * Cin_pad * Cout_pad * T,
        transcendentals=0,
        bytes_accessed=(xp.size * itemsize * n_j + w.size * itemsize * N
                        + N * rows_out * Cout_pad * 4 + Cout_pad * 4))

    out = pl.pallas_call(
        kernel,
        out_shape=jax.ShapeDtypeStruct((N, rows_out, Cout_pad), jnp.float32),
        grid_spec=pltpu.PrefetchScalarGridSpec(
            num_scalar_prefetch=0,
            grid=grid,
            in_specs=[
                # activation slab: all phases, one image, full rows, one Cin tile
                pl.BlockSpec((P, None, rows_in, tc), lambda n, j, k: (0, n, 0, k)),
                # per-tap weights: all taps, one Cin tile, one Cout tile
                pl.BlockSpec((T, tc, tn), lambda n, j, k: (0, k, j)),
                # folded BN bias: resident across n/k
                pl.BlockSpec((1, tn), lambda n, j, k: (0, j)),
            ],
            out_specs=pl.BlockSpec((None, rows_out, tn), lambda n, j, k: (n, 0, j)),
        ),
        compiler_params=pltpu.CompilerParams(
            dimension_semantics=("parallel", "parallel", "arbitrary"),
            vmem_limit_bytes=32 * 1024 * 1024),
        cost_estimate=cost,
    )(xp, w, bias)

    out = out.reshape(N, Ho, Ws, Cout_pad)[:, :, :Wo, :Cout]
    return jnp.transpose(out, (0, 3, 1, 2))


def _reference(x_nchw, weight_oihw, bn_gamma, bn_beta, bn_mean, bn_var,
               *, stride=1, pad=0, dilation=1, eps=1e-5):
    y = lax.conv_general_dilated(
        x_nchw.astype(jnp.float32), weight_oihw.astype(jnp.float32),
        window_strides=(stride, stride),
        padding=((pad, pad), (pad, pad)),
        rhs_dilation=(dilation, dilation),
        dimension_numbers=("NCHW", "OIHW", "NCHW"))
    scale = (bn_gamma / jnp.sqrt(bn_var + eps)).reshape(1, -1, 1, 1)
    bias = (bn_beta - bn_mean * bn_gamma / jnp.sqrt(bn_var + eps)).reshape(1, -1, 1, 1)
    return jnp.maximum(y * scale + bias, 0.0)


if __name__ == "__main__":
    # ConvBnRelu(in_planes=4, out_planes=8, ksize=3, ...) — ASPP-style configs.
    N, Cin, H, W = 2, 4, 16, 16
    Cout, KH, KW = 8, 3, 3

    key = jax.random.PRNGKey(0)
    kx, kw_, kg, kb, km, kv = jax.random.split(key, 6)
    x = jax.random.normal(kx, (N, Cin, H, W), dtype=jnp.float32)
    weight = 0.1 * jax.random.normal(kw_, (Cout, Cin, KH, KW), dtype=jnp.float32)
    gamma = 1.0 + 0.1 * jax.random.normal(kg, (Cout,), jnp.float32)
    beta = 0.1 * jax.random.normal(kb, (Cout,), jnp.float32)
    run_mean = 0.1 * jax.random.normal(km, (Cout,), jnp.float32)
    run_var = jnp.abs(jax.random.normal(kv, (Cout,), jnp.float32)) + 0.5

    configs = [
        dict(stride=1, pad=1, dilation=1),   # plain 3x3
        dict(stride=1, pad=2, dilation=2),   # dilated 3x3 (ASPP branch)
        dict(stride=2, pad=1, dilation=1),   # strided 3x3
    ]
    for cfg in configs:
        ref = _reference(x, weight, gamma, beta, run_mean, run_var, **cfg)

        # exact path (f32 MXU passes)
        out32 = conv_bn_relu(x, weight, gamma, beta, run_mean, run_var,
                             compute_dtype=jnp.float32, **cfg)
        out32 = jax.block_until_ready(out32)
        assert out32.shape == ref.shape, (cfg, out32.shape, ref.shape)
        err32 = float(jnp.max(jnp.abs(out32 - ref)))
        assert jnp.allclose(out32, ref, atol=1e-4, rtol=1e-4), (cfg, err32)

        # default fast path (bf16 inputs, f32 accumulation — all generations)
        out16 = conv_bn_relu(x, weight, gamma, beta, run_mean, run_var, **cfg)
        out16 = jax.block_until_ready(out16)
        err16 = float(jnp.max(jnp.abs(out16 - ref)))
        assert jnp.allclose(out16, ref, atol=5e-2, rtol=5e-2), (cfg, err16)

    # 1x1 ConvBnRelu (ASPP reduction branch)
    weight1 = 0.1 * jax.random.normal(kw_, (Cout, Cin, 1, 1), dtype=jnp.float32)
    ref1 = _reference(x, weight1, gamma, beta, run_mean, run_var,
                      stride=1, pad=0, dilation=1)
    out1 = conv_bn_relu(x, weight1, gamma, beta, run_mean, run_var,
                        stride=1, pad=0, dilation=1,
                        compute_dtype=jnp.float32)
    out1 = jax.block_until_ready(out1)
    assert jnp.allclose(out1, ref1, atol=1e-4, rtol=1e-4), \
        float(jnp.max(jnp.abs(out1 - ref1)))

    print("KERNEL_OK")
</pallas_src>

<mosaic_0001>
module attributes {stable_mosaic.version = 11 : i64} {
  func.func @_conv_bn_relu_kernel(%arg0: i32, %arg1: i32, %arg2: i32, %arg3: memref<1x1x326x128xf32, #tpu.memory_space<vmem>>, %arg4: memref<9x128x128xf32, #tpu.memory_space<vmem>>, %arg5: memref<1x128xf32, #tpu.memory_space<vmem>>, %arg6: memref<1x288x128xf32, #tpu.memory_space<vmem>>) attributes {dimension_semantics = [#tpu.dimension_semantics<parallel>, #tpu.dimension_semantics<parallel>, #tpu.dimension_semantics<arbitrary>], iteration_bounds = array<i64: 2, 1, 1>, scalar_prefetch = 0 : i64, scratch_operands = 0 : i64, tpu.core_type = #tpu.core_type<tc>, window_params = [{transform_indices = @transform_0, window_bounds = array<i64: 1, 1, 326, 128>}, {transform_indices = @transform_1, window_bounds = array<i64: 9, 128, 128>}, {transform_indices = @transform_2, window_bounds = array<i64: 1, 128>}, {transform_indices = @transform_3, window_bounds = array<i64: 1, 288, 128>}]} {
    %c0 = arith.constant 0 : index
    %c0_0 = arith.constant 0 : index
    %c0_1 = arith.constant 0 : index
    %c0_2 = arith.constant 0 : index
    %0 = vector.load %arg3[%c0, %c0_0, %c0_1, %c0_2] : memref<1x1x326x128xf32, #tpu.memory_space<vmem>>, vector<1x1x288x128xf32>
    %1 = vector.shape_cast %0 : vector<1x1x288x128xf32> to vector<288x128xf32>
    %c0_3 = arith.constant 0 : index
    %c0_4 = arith.constant 0 : index
    %c0_5 = arith.constant 0 : index
    %2 = vector.load %arg4[%c0_3, %c0_4, %c0_5] : memref<9x128x128xf32, #tpu.memory_space<vmem>>, vector<1x128x128xf32>
    %3 = vector.shape_cast %2 : vector<1x128x128xf32> to vector<128x128xf32>
    %cst = arith.constant dense<0.000000e+00> : vector<288x128xf32>
    %4 = tpu.matmul %1, %3, %cst {dimension_numbers = #tpu.dot_dimension_numbers<[1], [0], [0], [1], [0, 0, 1, 1], [], []>} : vector<288x128xf32>, vector<128x128xf32>, vector<288x128xf32> -> vector<288x128xf32>
    %c0_6 = arith.constant 0 : index
    %c0_7 = arith.constant 0 : index
    %c1 = arith.constant 1 : index
    %c0_8 = arith.constant 0 : index
    %5 = vector.load %arg3[%c0_6, %c0_7, %c1, %c0_8] : memref<1x1x326x128xf32, #tpu.memory_space<vmem>>, vector<1x1x288x128xf32>
    %6 = vector.shape_cast %5 : vector<1x1x288x128xf32> to vector<288x128xf32>
    %c1_9 = arith.constant 1 : index
    %c0_10 = arith.constant 0 : index
    %c0_11 = arith.constant 0 : index
    %7 = vector.load %arg4[%c1_9, %c0_10, %c0_11] : memref<9x128x128xf32, #tpu.memory_space<vmem>>, vector<1x128x128xf32>
    %8 = vector.shape_cast %7 : vector<1x128x128xf32> to vector<128x128xf32>
    %cst_12 = arith.constant dense<0.000000e+00> : vector<288x128xf32>
    %9 = tpu.matmul %6, %8, %cst_12 {dimension_numbers = #tpu.dot_dimension_numbers<[1], [0], [0], [1], [0, 0, 1, 1], [], []>} : vector<288x128xf32>, vector<128x128xf32>, vector<288x128xf32> -> vector<288x128xf32>
    %10 = arith.addf %4, %9 : vector<288x128xf32>
    %c0_13 = arith.constant 0 : index
    %c0_14 = arith.constant 0 : index
    %c2 = arith.constant 2 : index
    %c0_15 = arith.constant 0 : index
    %11 = vector.load %arg3[%c0_13, %c0_14, %c2, %c0_15] : memref<1x1x326x128xf32, #tpu.memory_space<vmem>>, vector<1x1x288x128xf32>
    %12 = vector.shape_cast %11 : vector<1x1x288x128xf32> to vector<288x128xf32>
    %c2_16 = arith.constant 2 : index
    %c0_17 = arith.constant 0 : index
    %c0_18 = arith.constant 0 : index
    %13 = vector.load %arg4[%c2_16, %c0_17, %c0_18] : memref<9x128x128xf32, #tpu.memory_space<vmem>>, vector<1x128x128xf32>
    %14 = vector.shape_cast %13 : vector<1x128x128xf32> to vector<128x128xf32>
    %cst_19 = arith.constant dense<0.000000e+00> : vector<288x128xf32>
    %15 = tpu.matmul %12, %14, %cst_19 {dimension_numbers = #tpu.dot_dimension_numbers<[1], [0], [0], [1], [0, 0, 1, 1], [], []>} : vector<288x128xf32>, vector<128x128xf32>, vector<288x128xf32> -> vector<288x128xf32>
    %16 = arith.addf %10, %15 : vector<288x128xf32>
    %c0_20 = arith.constant 0 : index
    %c0_21 = arith.constant 0 : index
    %c18 = arith.constant 18 : index
    %c0_22 = arith.constant 0 : index
    %17 = vector.load %arg3[%c0_20, %c0_21, %c18, %c0_22] : memref<1x1x326x128xf32, #tpu.memory_space<vmem>>, vector<1x1x288x128xf32>
    %18 = vector.shape_cast %17 : vector<1x1x288x128xf32> to vector<288x128xf32>
    %c3 = arith.constant 3 : index
    %c0_23 = arith.constant 0 : index
    %c0_24 = arith.constant 0 : index
    %19 = vector.load %arg4[%c3, %c0_23, %c0_24] : memref<9x128x128xf32, #tpu.memory_space<vmem>>, vector<1x128x128xf32>
    %20 = vector.shape_cast %19 : vector<1x128x128xf32> to vector<128x128xf32>
    %cst_25 = arith.constant dense<0.000000e+00> : vector<288x128xf32>
    %21 = tpu.matmul %18, %20, %cst_25 {dimension_numbers = #tpu.dot_dimension_numbers<[1], [0], [0], [1], [0, 0, 1, 1], [], []>} : vector<288x128xf32>, vector<128x128xf32>, vector<288x128xf32> -> vector<288x128xf32>
    %22 = arith.addf %16, %21 : vector<288x128xf32>
    %c0_26 = arith.constant 0 : index
    %c0_27 = arith.constant 0 : index
    %c19 = arith.constant 19 : index
    %c0_28 = arith.constant 0 : index
    %23 = vector.load %arg3[%c0_26, %c0_27, %c19, %c0_28] : memref<1x1x326x128xf32, #tpu.memory_space<vmem>>, vector<1x1x288x128xf32>
    %24 = vector.shape_cast %23 : vector<1x1x288x128xf32> to vector<288x128xf32>
    %c4 = arith.constant 4 : index
    %c0_29 = arith.constant 0 : index
    %c0_30 = arith.constant 0 : index
    %25 = vector.load %arg4[%c4, %c0_29, %c0_30] : memref<9x128x128xf32, #tpu.memory_space<vmem>>, vector<1x128x128xf32>
    %26 = vector.shape_cast %25 : vector<1x128x128xf32> to vector<128x128xf32>
    %cst_31 = arith.constant dense<0.000000e+00> : vector<288x128xf32>
    %27 = tpu.matmul %24, %26, %cst_31 {dimension_numbers = #tpu.dot_dimension_numbers<[1], [0], [0], [1], [0, 0, 1, 1], [], []>} : vector<288x128xf32>, vector<128x128xf32>, vector<288x128xf32> -> vector<288x128xf32>
    %28 = arith.addf %22, %27 : vector<288x128xf32>
    %c0_32 = arith.constant 0 : index
    %c0_33 = arith.constant 0 : index
    %c20 = arith.constant 20 : index
    %c0_34 = arith.constant 0 : index
    %29 = vector.load %arg3[%c0_32, %c0_33, %c20, %c0_34] : memref<1x1x326x128xf32, #tpu.memory_space<vmem>>, vector<1x1x288x128xf32>
    %30 = vector.shape_cast %29 : vector<1x1x288x128xf32> to vector<288x128xf32>
    %c5 = arith.constant 5 : index
    %c0_35 = arith.constant 0 : index
    %c0_36 = arith.constant 0 : index
    %31 = vector.load %arg4[%c5, %c0_35, %c0_36] : memref<9x128x128xf32, #tpu.memory_space<vmem>>, vector<1x128x128xf32>
    %32 = vector.shape_cast %31 : vector<1x128x128xf32> to vector<128x128xf32>
    %cst_37 = arith.constant dense<0.000000e+00> : vector<288x128xf32>
    %33 = tpu.matmul %30, %32, %cst_37 {dimension_numbers = #tpu.dot_dimension_numbers<[1], [0], [0], [1], [0, 0, 1, 1], [], []>} : vector<288x128xf32>, vector<128x128xf32>, vector<288x128xf32> -> vector<288x128xf32>
    %34 = arith.addf %28, %33 : vector<288x128xf32>
    %c0_38 = arith.constant 0 : index
    %c0_39 = arith.constant 0 : index
    %c36 = arith.constant 36 : index
    %c0_40 = arith.constant 0 : index
    %35 = vector.load %arg3[%c0_38, %c0_39, %c36, %c0_40] : memref<1x1x326x128xf32, #tpu.memory_space<vmem>>, vector<1x1x288x128xf32>
    %36 = vector.shape_cast %35 : vector<1x1x288x128xf32> to vector<288x128xf32>
    %c6 = arith.constant 6 : index
    %c0_41 = arith.constant 0 : index
    %c0_42 = arith.constant 0 : index
    %37 = vector.load %arg4[%c6, %c0_41, %c0_42] : memref<9x128x128xf32, #tpu.memory_space<vmem>>, vector<1x128x128xf32>
    %38 = vector.shape_cast %37 : vector<1x128x128xf32> to vector<128x128xf32>
    %cst_43 = arith.constant dense<0.000000e+00> : vector<288x128xf32>
    %39 = tpu.matmul %36, %38, %cst_43 {dimension_numbers = #tpu.dot_dimension_numbers<[1], [0], [0], [1], [0, 0, 1, 1], [], []>} : vector<288x128xf32>, vector<128x128xf32>, vector<288x128xf32> -> vector<288x128xf32>
    %40 = arith.addf %34, %39 : vector<288x128xf32>
    %c0_44 = arith.constant 0 : index
    %c0_45 = arith.constant 0 : index
    %c37 = arith.constant 37 : index
    %c0_46 = arith.constant 0 : index
    %41 = vector.load %arg3[%c0_44, %c0_45, %c37, %c0_46] : memref<1x1x326x128xf32, #tpu.memory_space<vmem>>, vector<1x1x288x128xf32>
    %42 = vector.shape_cast %41 : vector<1x1x288x128xf32> to vector<288x128xf32>
    %c7 = arith.constant 7 : index
    %c0_47 = arith.constant 0 : index
    %c0_48 = arith.constant 0 : index
    %43 = vector.load %arg4[%c7, %c0_47, %c0_48] : memref<9x128x128xf32, #tpu.memory_space<vmem>>, vector<1x128x128xf32>
    %44 = vector.shape_cast %43 : vector<1x128x128xf32> to vector<128x128xf32>
    %cst_49 = arith.constant dense<0.000000e+00> : vector<288x128xf32>
    %45 = tpu.matmul %42, %44, %cst_49 {dimension_numbers = #tpu.dot_dimension_numbers<[1], [0], [0], [1], [0, 0, 1, 1], [], []>} : vector<288x128xf32>, vector<128x128xf32>, vector<288x128xf32> -> vector<288x128xf32>
    %46 = arith.addf %40, %45 : vector<288x128xf32>
    %c0_50 = arith.constant 0 : index
    %c0_51 = arith.constant 0 : index
    %c38 = arith.constant 38 : index
    %c0_52 = arith.constant 0 : index
    %47 = vector.load %arg3[%c0_50, %c0_51, %c38, %c0_52] : memref<1x1x326x128xf32, #tpu.memory_space<vmem>>, vector<1x1x288x128xf32>
    %48 = vector.shape_cast %47 : vector<1x1x288x128xf32> to vector<288x128xf32>
    %c8 = arith.constant 8 : index
    %c0_53 = arith.constant 0 : index
    %c0_54 = arith.constant 0 : index
    %49 = vector.load %arg4[%c8, %c0_53, %c0_54] : memref<9x128x128xf32, #tpu.memory_space<vmem>>, vector<1x128x128xf32>
    %50 = vector.shape_cast %49 : vector<1x128x128xf32> to vector<128x128xf32>
    %cst_55 = arith.constant dense<0.000000e+00> : vector<288x128xf32>
    %51 = tpu.matmul %48, %50, %cst_55 {dimension_numbers = #tpu.dot_dimension_numbers<[1], [0], [0], [1], [0, 0, 1, 1], [], []>} : vector<288x128xf32>, vector<128x128xf32>, vector<288x128xf32> -> vector<288x128xf32>
    %52 = arith.addf %46, %51 : vector<288x128xf32>
    %c0_56 = arith.constant 0 : index
    %c0_57 = arith.constant 0 : index
    %53 = vector.load %arg5[%c0_56, %c0_57] : memref<1x128xf32, #tpu.memory_space<vmem>>, vector<1x128xf32>
    %54 = vector.broadcast %53 : vector<1x128xf32> to vector<288x128xf32>
    %55 = arith.addf %52, %54 : vector<288x128xf32>
    %cst_58 = arith.constant 0.000000e+00 : f32
    %56 = vector.broadcast %cst_58 : f32 to vector<288x128xf32>
    %57 = arith.maximumf %55, %56 : vector<288x128xf32>
    %c0_59 = arith.constant 0 : index
    %c0_60 = arith.constant 0 : index
    %c0_61 = arith.constant 0 : index
    %58 = vector.load %arg6[%c0_59, %c0_60, %c0_61] : memref<1x288x128xf32, #tpu.memory_space<vmem>>, vector<1x288x128xf32>
    %59 = vector.shape_cast %58 : vector<1x288x128xf32> to vector<288x128xf32>
    %60 = vector.shape_cast %57 : vector<288x128xf32> to vector<1x288x128xf32>
    tpu.vector_store %arg6[%c0_59, %c0_60, %c0_61], %60 {strides = array<i32>} : memref<1x288x128xf32, #tpu.memory_space<vmem>>, vector<1x288x128xf32>,
    return
  }
  func.func @transform_0(%arg0: i32, %arg1: i32, %arg2: i32) -> (i32, i32, i32, i32) {
    %c0_i32 = arith.constant 0 : i32
    %c0_i32_0 = arith.constant 0 : i32
    %c0_i32_1 = arith.constant 0 : i32
    return %c0_i32, %arg0, %c0_i32_0, %arg2 : i32, i32, i32, i32
  }
  func.func @transform_1(%arg0: i32, %arg1: i32, %arg2: i32) -> (i32, i32, i32) {
    %c0_i32 = arith.constant 0 : i32
    %c0_i32_0 = arith.constant 0 : i32
    return %c0_i32, %arg2, %arg1 : i32, i32, i32
  }
  func.func @transform_2(%arg0: i32, %arg1: i32, %arg2: i32) -> (i32, i32) {
    %c0_i32 = arith.constant 0 : i32
    %c0_i32_0 = arith.constant 0 : i32
    return %c0_i32, %arg1 : i32, i32
  }
  func.func @transform_3(%arg0: i32, %arg1: i32, %arg2: i32) -> (i32, i32, i32) {
    %c0_i32 = arith.constant 0 : i32
    %c0_i32_0 = arith.constant 0 : i32
    return %arg0, %c0_i32, %arg1 : i32, i32, i32
  }
}

</mosaic_0001>

<llo_original>
// kernel: tpu_custom_call.1
$region0: #{tpu_custom_call.1}
  #allocation0 [shape = 'u32[]', space=smem, size = 0x4, offset = 0x4, fixed_abs, tag = 'smem constant byte address 0x4 - core index']
  #allocation1 [shape = 'u32[72,128]{1,0:T(1,128)}', space=vmem, size = 0x9000, scoped, tag = 'internal scratch']
  %s0 = inlined_call_operand.vmem [shape: f32[1,2,326,128], index: 0, kind: input, shape index: {}]
  %s1 = inlined_call_operand.vmem [shape: f32[9,128,128], index: 1, kind: input, shape index: {}]
  %s2 = inlined_call_operand.vmem [shape: f32[1,128], index: 2, kind: input, shape index: {}]
  %s3 = inlined_call_operand.hbm [shape: f32[2,288,128], index: 3, kind: output, shape index: {}]
  %s4 = sld [smem:[#allocation0]]
  $region45: #{tpu_custom_call.1} parent=0
    _
  %s6 = ssub.s32 1, %s4
  %s7 = scalar_select 0, %s6, %s4
  $region1: #{tpu_custom_call.1} parent=0
    #allocation2 [shape = 'u8[294912]{0}', space=vmem, size = 0x48000, scoped, tag = 'output window, operand 0']
    #allocation3 [shape = 's32[2]{0}', space=sflag, size = 0x8, scoped, tag = 'scoped memory for tpu_custom_call.1']
    %8 = vsyncpa [#allocation3], 0
    %s9 = scalar_lea.sflag [#allocation3], 1
    %10 = vsyncpa %s9, 0
    loop: start=0, step=1, limit=4
    $region2: #{tpu_custom_call.1} parent=1 // loop_pre_header
      _
    $region3: #{tpu_custom_call.1} parent=1 // loop_header
      %s12 = sphi 0, %s16
      %p13 = scmp.ge.s32.totalorder %s12, 4
      %s19 = sphi 0, %s38
      %s20 = sphi 0, %s34
      %s21 = sphi 0, %s30
      %s22 = sphi 0, %s19
      %s23 = sphi 0, %s20
      %s24 = sphi 0, %s21
      %s25 = sphi 0, %s22
      %s26 = sphi 0, %s23
      %s27 = sphi 0, %s24
      %s43 = sphi 0, %s45
      %s46 = sphi 0, %s43
      %s47 = sphi 0, %s46
      %s63 = sphi 0, %s47
      %s71 = sphi 0, %s73
      %s74 = sphi 0, %s71
      %s75 = sphi 0, %s74
      %s91 = sphi 0, %s75
      %s97 = sphi 0, %s99
      %s100 = sphi 0, %s97
      %s101 = sphi 0, %s100
      %s117 = sphi 0, %s101
      %s125 = sphi 0, %s127
      %s128 = sphi 0, %s125
      %s129 = sphi 0, %s128
      %s145 = sphi 0, %s129
    $region4: #{tpu_custom_call.1} parent=1 // loop_header_branch
      %15 = sbr.rel (%p13) target = $region8
    $region5: #{tpu_custom_call.1} parent=1 // loop_body
      %s17 = ssub.s32 %s12, 1
      %s18 = ssub.s32 %s12, 2
      %s28 = sadd.s32 1, %s21
      %p29 = scmp.ge.s32.totalorder %s28, 1
      %s30 = scalar_select %p29, 0, %s28
      %s31 = sadd.s32 1, %s20
      %s32 = scalar_select %p29, %s31, %s20
      %p33 = scmp.ge.s32.totalorder %s32, 1
      %s34 = scalar_select %p33, 0, %s32
      %s35 = sadd.s32 1, %s19
      %s36 = scalar_select %p33, %s35, %s19
      %p37 = scmp.ge.s32.totalorder %s36, 2
      %s38 = scalar_select %p37, 0, %s36
      %s39 = ssub.s32 %s19, %s38
      %s40 = ssub.s32 %s21, %s30
      %s41 = sor.u32 %s39, %s40
      %p42 = scmp.eq.s32.totalorder %s41, 0
      %s44 = sadd.s32 %s43, 1
      %s45 = scalar_select %p42, %s43, %s44
      %p48 = pneg %p42
      %p49 = scmp.eq.s32.totalorder %s12, 1
      %p50 = por %p48, %p49
      %p51 = scmp.ne.s32.totalorder %s43, %s46
      %p52 = scmp.eq.s32.totalorder %s12, 0
      %p53 = por %p51, %p52
      %p54 = scmp.ne.s32.totalorder %s43, %s46
      %p55 = scmp.eq.s32.totalorder %s17, 1
      %p56 = por %p54, %p55
      %p57 = scmp.ne.s32.totalorder %s46, %s47
      %p58 = scmp.eq.s32.totalorder %s17, 0
      %p59 = por %p57, %p58
      %p60 = scmp.ne.s32.totalorder %s46, %s47
      %p61 = scmp.eq.s32.totalorder %s18, 1
      %p62 = por %p60, %p61
      %p64 = scmp.ne.s32.totalorder %s47, %s63
      %p65 = scmp.eq.s32.totalorder %s18, 0
      %p66 = por %p64, %p65
      %s67 = ssub.s32 %s21, %s30
      %s68 = ssub.s32 %s20, %s34
      %s69 = sor.u32 %s67, %s68
      %p70 = scmp.eq.s32.totalorder %s69, 0
      %s72 = sadd.s32 %s71, 1
      %s73 = scalar_select %p70, %s71, %s72
      %p76 = pneg %p70
      %p77 = scmp.eq.s32.totalorder %s12, 1
      %p78 = por %p76, %p77
      %p79 = scmp.ne.s32.totalorder %s71, %s74
      %p80 = scmp.eq.s32.totalorder %s12, 0
      %p81 = por %p79, %p80
      %p82 = scmp.ne.s32.totalorder %s71, %s74
      %p83 = scmp.eq.s32.totalorder %s17, 1
      %p84 = por %p82, %p83
      %p85 = scmp.ne.s32.totalorder %s74, %s75
      %p86 = scmp.eq.s32.totalorder %s17, 0
      %p87 = por %p85, %p86
      %p88 = scmp.ne.s32.totalorder %s74, %s75
      %p89 = scmp.eq.s32.totalorder %s18, 1
      %p90 = por %p88, %p89
      %p92 = scmp.ne.s32.totalorder %s75, %s91
      %p93 = scmp.eq.s32.totalorder %s18, 0
      %p94 = por %p92, %p93
      %s95 = ssub.s32 %s20, %s34
      %p96 = scmp.eq.s32.totalorder %s95, 0
      %s98 = sadd.s32 %s97, 1
      %s99 = scalar_select %p96, %s97, %s98
      %p102 = pneg %p96
      %p103 = scmp.eq.s32.totalorder %s12, 1
      %p104 = por %p102, %p103
      %p105 = scmp.ne.s32.totalorder %s97, %s100
      %p106 = scmp.eq.s32.totalorder %s12, 0
      %p107 = por %p105, %p106
      %p108 = scmp.ne.s32.totalorder %s97, %s100
      %p109 = scmp.eq.s32.totalorder %s17, 1
      %p110 = por %p108, %p109
      %p111 = scmp.ne.s32.totalorder %s100, %s101
      %p112 = scmp.eq.s32.totalorder %s17, 0
      %p113 = por %p111, %p112
      %p114 = scmp.ne.s32.totalorder %s100, %s101
      %p115 = scmp.eq.s32.totalorder %s18, 1
      %p116 = por %p114, %p115
      %p118 = scmp.ne.s32.totalorder %s101, %s117
      %p119 = scmp.eq.s32.totalorder %s18, 0
      %p120 = por %p118, %p119
      %s121 = ssub.s32 %s19, %s38
      %s122 = ssub.s32 %s20, %s34
      %s123 = sor.u32 %s121, %s122
      %p124 = scmp.eq.s32.totalorder %s123, 0
      %s126 = sadd.s32 %s125, 1
      %s127 = scalar_select %p124, %s125, %s126
      %p130 = pneg %p124
      %p131 = scmp.eq.s32.totalorder %s12, 1
      %p132 = por %p130, %p131
      %p133 = scmp.ne.s32.totalorder %s125, %s128
      %p134 = scmp.eq.s32.totalorder %s12, 0
      %p135 = por %p133, %p134
      %p136 = scmp.ne.s32.totalorder %s125, %s128
      %p137 = scmp.eq.s32.totalorder %s17, 1
      %p138 = por %p136, %p137
      %p139 = scmp.ne.s32.totalorder %s128, %s129
      %p140 = scmp.eq.s32.totalorder %s17, 0
      %p141 = por %p139, %p140
      %p142 = scmp.ne.s32.totalorder %s128, %s129
      %p143 = scmp.eq.s32.totalorder %s18, 1
      %p144 = por %p142, %p143
      %p146 = scmp.ne.s32.totalorder %s129, %s145
      %p147 = scmp.eq.s32.totalorder %s18, 0
      %p148 = por %p146, %p147
      %p149 = scmp.le.s32.totalorder 1, %s12
      %p150 = scmp.lt.s32.totalorder %s12, 3
      %p151 = pnand %p149, %p150
      %p152 = pneg %p151
      // Predicated region
      $region9: #{tpu_custom_call.1} parent=5 // pred_check
        _
      $region10: #{tpu_custom_call.1} parent=5 // pred_check_branch
        %154 = sbr.rel (%p151) target = $region12
      $region11: #{tpu_custom_call.1} parent=5 // pred_region
        %s155 = ssub.s32 %s12, 1
        // Predicated region
        $region13: #{tpu_custom_call.1} parent=11 // pred_check
          %p156 = pneg %p87
        $region14: #{tpu_custom_call.1} parent=11 // pred_check_branch
          %158 = sbr.rel (%p156) target = $region16
        $region15: #{tpu_custom_call.1} parent=11 // pred_region
          %s159 = smul.u32 16, %s24
          %p160 = scmp.lt.s32.totalorder %s159, 15
          %s161 = scalar_select %p160, %s159, 15
          %p162 = scmp.lt.s32.totalorder %s23, 0
          %s163 = scalar_select %p162, %s23, 0
          %s164 = sadd.s32 %s163, %s161
          %s165 = smul.addr %s164, 8
          %s166 = scalar_lea.vmem %s1, %s165
          %s167 = smul.u32 16, %s24
        $region16: #{tpu_custom_call.1} parent=11 // pred_fallthru
          _
        // Predicated region
        $region17: #{tpu_custom_call.1} parent=11 // pred_check
          %p168 = pneg %p113
        $region18: #{tpu_custom_call.1} parent=11 // pred_check_branch
          %170 = sbr.rel (%p168) target = $region20
        $region19: #{tpu_custom_call.1} parent=11 // pred_region
          %p171 = scmp.lt.s32.totalorder %s23, 0
          %s172 = scalar_select %p171, %s23, 0
          %s173 = scalar_lea.vmem %s2, %s172
        $region20: #{tpu_custom_call.1} parent=11 // pred_fallthru
          _
      $region12: #{tpu_custom_call.1} parent=5 // pred_fallthru
        _
      %p174 = scmp.lt.s32.totalorder %s12, 2
      // Predicated region
      $region21: #{tpu_custom_call.1} parent=5 // pred_check
        %p175 = pneg %p174
      $region22: #{tpu_custom_call.1} parent=5 // pred_check_branch
        %177 = sbr.rel (%p175) target = $region24
      $region23: #{tpu_custom_call.1} parent=5 // pred_region
        // Predicated region
        $region25: #{tpu_custom_call.1} parent=23 // pred_check
          %p178 = pneg %p53
        $region26: #{tpu_custom_call.1} parent=23 // pred_check_branch
          %180 = sbr.rel (%p178) target = $region28
        $region27: #{tpu_custom_call.1} parent=23 // pred_region
          %p181 = scmp.lt.s32.totalorder %s19, 1
          %s182 = scalar_select %p181, %s19, 1
          %p183 = scmp.lt.s32.totalorder %s21, 0
          %s184 = scalar_select %p183, %s21, 0
          %s185 = smul.addr %s182, 41
          %s186 = sadd.s32 %s184, %s185
          %s187 = smul.addr %s186, 8
          %s188 = scalar_lea.vmem %s0, %s187
        $region28: #{tpu_custom_call.1} parent=23 // pred_fallthru
          _
      $region24: #{tpu_custom_call.1} parent=5 // pred_fallthru
        _
      %p189 = scmp.le.s32.totalorder 1, %s12
      %p190 = scmp.lt.s32.totalorder %s12, 3
      %p191 = pnand %p189, %p190
      %p192 = pneg %p191
      // Predicated region
      $region29: #{tpu_custom_call.1} parent=5 // pred_check
        _
      $region30: #{tpu_custom_call.1} parent=5 // pred_check_branch
        %194 = sbr.rel (%p191) target = $region32
      $region31: #{tpu_custom_call.1} parent=5 // pred_region
        %s195 = ssub.s32 %s12, 1
        %p196 = scmp.lt.s32.totalorder %s22, 1
        %s197 = scalar_select %p196, %s22, 1
        %p198 = scmp.lt.s32.totalorder %s24, 0
        %s199 = scalar_select %p198, %s24, 0
        %s200 = smul.addr %s197, 41
        %s201 = sadd.s32 %s199, %s200
        %s202 = smul.addr %s201, 8
        %s203 = scalar_lea.vmem %s0, %s202
        %p204 = pneg %p59
        %p205 = pneg %p56
        %s206 = smul.u32 16, %s24
        %p207 = scmp.lt.s32.totalorder %s206, 15
        %s208 = scalar_select %p207, %s206, 15
        %p209 = scmp.lt.s32.totalorder %s23, 0
        %s210 = scalar_select %p209, %s23, 0
        %s211 = sadd.s32 %s210, %s208
        %s212 = smul.addr %s211, 8
        %s213 = scalar_lea.vmem %s1, %s212
        %p214 = pneg %p87
        %p215 = pneg %p84
        %p216 = scmp.lt.s32.totalorder %s23, 0
        %s217 = scalar_select %p216, %s23, 0
        %s218 = scalar_lea.vmem %s2, %s217
        %p219 = pneg %p113
        %p220 = pneg %p110
        %p221 = pneg %p141
        %p222 = pneg %p138
        %s223 = sand.u32 %s128, 1
        %s224 = scalar_lea.sflag [#allocation3], %s223
        %s225 = sand.u32 %s128, 1
        %s226 = smul.addr %s225, 288
        %s227 = scalar_lea.vmem [#allocation2], %s226
        %p228 = scmp.lt.s32.totalorder %s22, 1
        %s229 = scalar_select %p228, %s22, 1
        %p230 = scmp.lt.s32.totalorder %s24, 0
        %s231 = scalar_select %p230, %s24, 0
        %s232 = smul.addr %s229, 41
        %s233 = sadd.s32 %s231, %s232
        %s234 = smul.addr %s233, 8
        %s235 = scalar_lea.vmem %s0, %s234
        %s236 = smul.u32 16, %s24
        %p237 = scmp.lt.s32.totalorder %s236, 15
        %s238 = scalar_select %p237, %s236, 15
        %p239 = scmp.lt.s32.totalorder %s23, 0
        %s240 = scalar_select %p239, %s23, 0
        %s241 = sadd.s32 %s240, %s238
        %s242 = smul.addr %s241, 8
        %s243 = scalar_lea.vmem %s1, %s242
        %s244 = smul.u32 16, %s24
        %p245 = scmp.lt.s32.totalorder %s23, 0
        %s246 = scalar_select %p245, %s23, 0
        %s247 = scalar_lea.vmem %s2, %s246
        %v248 = vld [vmem:[%s235] sm:$0xff]
        %v249 = vld [vmem:[%s235 + $0x8] sm:$0xff]
        %v250 = vld [vmem:[%s235 + $0x10] sm:$0xff]
        %v251 = vld [vmem:[%s235 + $0x18] sm:$0xff]
        %v252 = vld [vmem:[%s235 + $0x20] sm:$0xff]
        %v253 = vld [vmem:[%s235 + $0x28] sm:$0xff]
        %v254 = vld [vmem:[%s235 + $0x30] sm:$0xff]
        %v255 = vld [vmem:[%s235 + $0x38] sm:$0xff]
        %v256 = vld [vmem:[%s235 + $0x40] sm:$0xff]
        %v257 = vld [vmem:[%s235 + $0x48] sm:$0xff]
        %v258 = vld [vmem:[%s235 + $0x50] sm:$0xff]
        %v259 = vld [vmem:[%s235 + $0x58] sm:$0xff]
        %v260 = vld [vmem:[%s235 + $0x60] sm:$0xff]
        %v261 = vld [vmem:[%s235 + $0x68] sm:$0xff]
        %v262 = vld [vmem:[%s235 + $0x70] sm:$0xff]
        %v263 = vld [vmem:[%s235 + $0x78] sm:$0xff]
        %v264 = vld [vmem:[%s235 + $0x80] sm:$0xff]
        %v265 = vld [vmem:[%s235 + $0x88] sm:$0xff]
        %v266 = vld [vmem:[%s235 + $0x90] sm:$0xff]
        %v267 = vld [vmem:[%s235 + $0x98] sm:$0xff]
        %v268 = vld [vmem:[%s235 + $0xa0] sm:$0xff]
        %v269 = vld [vmem:[%s235 + $0xa8] sm:$0xff]
        %v270 = vld [vmem:[%s235 + $0xb0] sm:$0xff]
        %v271 = vld [vmem:[%s235 + $0xb8] sm:$0xff]
        %v272 = vld [vmem:[%s235 + $0xc0] sm:$0xff]
        %v273 = vld [vmem:[%s235 + $0xc8] sm:$0xff]
        %v274 = vld [vmem:[%s235 + $0xd0] sm:$0xff]
        %v275 = vld [vmem:[%s235 + $0xd8] sm:$0xff]
        %v276 = vld [vmem:[%s235 + $0xe0] sm:$0xff]
        %v277 = vld [vmem:[%s235 + $0xe8] sm:$0xff]
        %v278 = vld [vmem:[%s235 + $0xf0] sm:$0xff]
        %v279 = vld [vmem:[%s235 + $0xf8] sm:$0xff]
        %v280 = vld [vmem:[%s235 + $0x100] sm:$0xff]
        %v281 = vld [vmem:[%s235 + $0x108] sm:$0xff]
        %v282 = vld [vmem:[%s235 + $0x110] sm:$0xff]
        %v283 = vld [vmem:[%s235 + $0x118] sm:$0xff]
        %v284 = vld [vmem:[%s243] sm:$0xff]
        %v285 = vld [vmem:[%s243 + $0x8] sm:$0xff]
        %v286 = vld [vmem:[%s243 + $0x10] sm:$0xff]
        %v287 = vld [vmem:[%s243 + $0x18] sm:$0xff]
        %v288 = vld [vmem:[%s243 + $0x20] sm:$0xff]
        %v289 = vld [vmem:[%s243 + $0x28] sm:$0xff]
        %v290 = vld [vmem:[%s243 + $0x30] sm:$0xff]
        %v291 = vld [vmem:[%s243 + $0x38] sm:$0xff]
        %v292 = vld [vmem:[%s243 + $0x40] sm:$0xff]
        %v293 = vld [vmem:[%s243 + $0x48] sm:$0xff]
        %v294 = vld [vmem:[%s243 + $0x50] sm:$0xff]
        %v295 = vld [vmem:[%s243 + $0x58] sm:$0xff]
        %v296 = vld [vmem:[%s243 + $0x60] sm:$0xff]
        %v297 = vld [vmem:[%s243 + $0x68] sm:$0xff]
        %v298 = vld [vmem:[%s243 + $0x70] sm:$0xff]
        %v299 = vld [vmem:[%s243 + $0x78] sm:$0xff]
        %v300 = vld [vmem:[%s235 + $0x1] sm:$0xff]
        %v301 = vld [vmem:[%s235 + $0x9] sm:$0xff]
        %v302 = vld [vmem:[%s235 + $0x11] sm:$0xff]
        %v303 = vld [vmem:[%s235 + $0x19] sm:$0xff]
        %v304 = vld [vmem:[%s235 + $0x21] sm:$0xff]
        %v305 = vld [vmem:[%s235 + $0x29] sm:$0xff]
        %v306 = vld [vmem:[%s235 + $0x31] sm:$0xff]
        %v307 = vld [vmem:[%s235 + $0x39] sm:$0xff]
        %v308 = vld [vmem:[%s235 + $0x41] sm:$0xff]
        %v309 = vld [vmem:[%s235 + $0x49] sm:$0xff]
        %v310 = vld [vmem:[%s235 + $0x51] sm:$0xff]
        %v311 = vld [vmem:[%s235 + $0x59] sm:$0xff]
        %v312 = vld [vmem:[%s235 + $0x61] sm:$0xff]
        %v313 = vld [vmem:[%s235 + $0x69] sm:$0xff]
        %v314 = vld [vmem:[%s235 + $0x71] sm:$0xff]
        %v315 = vld [vmem:[%s235 + $0x79] sm:$0xff]
        %v316 = vld [vmem:[%s235 + $0x81] sm:$0xff]
        %v317 = vld [vmem:[%s235 + $0x89] sm:$0xff]
        %v318 = vld [vmem:[%s235 + $0x91] sm:$0xff]
        %v319 = vld [vmem:[%s235 + $0x99] sm:$0xff]
        %v320 = vld [vmem:[%s235 + $0xa1] sm:$0xff]
        %v321 = vld [vmem:[%s235 + $0xa9] sm:$0xff]
        %v322 = vld [vmem:[%s235 + $0xb1] sm:$0xff]
        %v323 = vld [vmem:[%s235 + $0xb9] sm:$0xff]
        %v324 = vld [vmem:[%s235 + $0xc1] sm:$0xff]
        %v325 = vld [vmem:[%s235 + $0xc9] sm:$0xff]
        %v326 = vld [vmem:[%s235 + $0xd1] sm:$0xff]
        %v327 = vld [vmem:[%s235 + $0xd9] sm:$0xff]
        %v328 = vld [vmem:[%s235 + $0xe1] sm:$0xff]
        %v329 = vld [vmem:[%s235 + $0xe9] sm:$0xff]
        %v330 = vld [vmem:[%s235 + $0xf1] sm:$0xff]
        %v331 = vld [vmem:[%s235 + $0xf9] sm:$0xff]
        %v332 = vld [vmem:[%s235 + $0x101] sm:$0xff]
        %v333 = vld [vmem:[%s235 + $0x109] sm:$0xff]
        %v334 = vld [vmem:[%s235 + $0x111] sm:$0xff]
        %v335 = vld [vmem:[%s235 + $0x119] sm:$0xff]
        %s336 = scalar_lea.vmem %s243, 128
        %v337 = vld [vmem:[%s336] sm:$0xff]
        %v338 = vld [vmem:[%s336 + $0x8] sm:$0xff]
        %v339 = vld [vmem:[%s336 + $0x10] sm:$0xff]
        %v340 = vld [vmem:[%s336 + $0x18] sm:$0xff]
        %v341 = vld [vmem:[%s336 + $0x20] sm:$0xff]
        %v342 = vld [vmem:[%s336 + $0x28] sm:$0xff]
        %v343 = vld [vmem:[%s336 + $0x30] sm:$0xff]
        %v344 = vld [vmem:[%s336 + $0x38] sm:$0xff]
        %v345 = vld [vmem:[%s336 + $0x40] sm:$0xff]
        %v346 = vld [vmem:[%s336 + $0x48] sm:$0xff]
        %v347 = vld [vmem:[%s336 + $0x50] sm:$0xff]
        %v348 = vld [vmem:[%s336 + $0x58] sm:$0xff]
        %v349 = vld [vmem:[%s336 + $0x60] sm:$0xff]
        %v350 = vld [vmem:[%s336 + $0x68] sm:$0xff]
        %v351 = vld [vmem:[%s336 + $0x70] sm:$0xff]
        %v352 = vld [vmem:[%s336 + $0x78] sm:$0xff]
        %353 = vmatpush.msra.mxu0 %v352
        %354 = vmatpush.msra.mxu0 %v351
        %355 = vmatpush.msra.mxu0 %v350
        %356 = vmatpush.msra.mxu0 %v349
        %357 = vmatpush.msra.mxu0 %v348
        %358 = vmatpush.msra.mxu0 %v347
        %359 = vmatpush.msra.mxu0 %v346
        %360 = vmatpush.msra.mxu0 %v345
        %361 = vmatpush.msra.mxu0 %v344
        %362 = vmatpush.msra.mxu0 %v343
        %363 = vmatpush.msra.mxu0 %v342
        %364 = vmatpush.msra.mxu0 %v341
        %365 = vmatpush.msra.mxu0 %v340
        %366 = vmatpush.msra.mxu0 %v339
        %367 = vmatpush.msra.mxu0 %v338
        %368 = vmatpush.msra.mxu0 %v337
        %369 = vmatmul.f32.gmra.mxu0 %v300
        %v370 = vpop.f32.mrf.mxu0
        %v371 = vadd.f32 0.0, %v370
        %372 = vmatmul.f32.gmra.mxu0 %v301
        %v373 = vpop.f32.mrf.mxu0
        %v374 = vadd.f32 0.0, %v373
        %375 = vmatmul.f32.gmra.mxu0 %v302
        %v376 = vpop.f32.mrf.mxu0
        %v377 = vadd.f32 0.0, %v376
        %378 = vmatmul.f32.gmra.mxu0 %v303
        %v379 = vpop.f32.mrf.mxu0
        %v380 = vadd.f32 0.0, %v379
        %381 = vmatmul.f32.gmra.mxu0 %v304
        %v382 = vpop.f32.mrf.mxu0
        %v383 = vadd.f32 0.0, %v382
        %384 = vmatmul.f32.gmra.mxu0 %v305
        %v385 = vpop.f32.mrf.mxu0
        %v386 = vadd.f32 0.0, %v385
        %387 = vmatmul.f32.gmra.mxu0 %v306
        %v388 = vpop.f32.mrf.mxu0
        %v389 = vadd.f32 0.0, %v388
        %390 = vmatmul.f32.gmra.mxu0 %v307
        %v391 = vpop.f32.mrf.mxu0
        %v392 = vadd.f32 0.0, %v391
        %393 = vmatmul.f32.gmra.mxu0 %v308
        %v394 = vpop.f32.mrf.mxu0
        %v395 = vadd.f32 0.0, %v394
        %396 = vmatmul.f32.gmra.mxu0 %v309
        %v397 = vpop.f32.mrf.mxu0
        %v398 = vadd.f32 0.0, %v397
        %399 = vmatmul.f32.gmra.mxu0 %v310
        %v400 = vpop.f32.mrf.mxu0
        %v401 = vadd.f32 0.0, %v400
        %402 = vmatmul.f32.gmra.mxu0 %v311
        %v403 = vpop.f32.mrf.mxu0
        %v404 = vadd.f32 0.0, %v403
        %405 = vmatmul.f32.gmra.mxu0 %v312
        %v406 = vpop.f32.mrf.mxu0
        %v407 = vadd.f32 0.0, %v406
        %408 = vmatmul.f32.gmra.mxu0 %v313
        %v409 = vpop.f32.mrf.mxu0
        %v410 = vadd.f32 0.0, %v409
        %411 = vmatmul.f32.gmra.mxu0 %v314
        %v412 = vpop.f32.mrf.mxu0
        %v413 = vadd.f32 0.0, %v412
        %414 = vmatmul.f32.gmra.mxu0 %v315
        %v415 = vpop.f32.mrf.mxu0
        %v416 = vadd.f32 0.0, %v415
        %417 = vmatmul.f32.gmra.mxu0 %v316
        %v418 = vpop.f32.mrf.mxu0
        %v419 = vadd.f32 0.0, %v418
        %420 = vmatmul.f32.gmra.mxu0 %v317
        %v421 = vpop.f32.mrf.mxu0
        %v422 = vadd.f32 0.0, %v421
        %423 = vmatmul.f32.gmra.mxu0 %v318
        %v424 = vpop.f32.mrf.mxu0
        %v425 = vadd.f32 0.0, %v424
        %426 = vmatmul.f32.gmra.mxu0 %v319
        %v427 = vpop.f32.mrf.mxu0
        %v428 = vadd.f32 0.0, %v427
        %429 = vmatmul.f32.gmra.mxu0 %v320
        %v430 = vpop.f32.mrf.mxu0
        %v431 = vadd.f32 0.0, %v430
        %432 = vmatmul.f32.gmra.mxu0 %v321
        %v433 = vpop.f32.mrf.mxu0
        %v434 = vadd.f32 0.0, %v433
        %435 = vmatmul.f32.gmra.mxu0 %v322
        %v436 = vpop.f32.mrf.mxu0
        %v437 = vadd.f32 0.0, %v436
        %438 = vmatmul.f32.gmra.mxu0 %v323
        %v439 = vpop.f32.mrf.mxu0
        %v440 = vadd.f32 0.0, %v439
        %441 = vmatmul.f32.gmra.mxu0 %v324
        %v442 = vpop.f32.mrf.mxu0
        %v443 = vadd.f32 0.0, %v442
        %444 = vmatmul.f32.gmra.mxu0 %v325
        %v445 = vpop.f32.mrf.mxu0
        %v446 = vadd.f32 0.0, %v445
        %447 = vmatmul.f32.gmra.mxu0 %v326
        %v448 = vpop.f32.mrf.mxu0
        %v449 = vadd.f32 0.0, %v448
        %450 = vmatmul.f32.gmra.mxu0 %v327
        %v451 = vpop.f32.mrf.mxu0
        %v452 = vadd.f32 0.0, %v451
        %453 = vmatmul.f32.gmra.mxu0 %v328
        %v454 = vpop.f32.mrf.mxu0
        %v455 = vadd.f32 0.0, %v454
        %456 = vmatmul.f32.gmra.mxu0 %v329
        %v457 = vpop.f32.mrf.mxu0
        %v458 = vadd.f32 0.0, %v457
        %459 = vmatmul.f32.gmra.mxu0 %v330
        %v460 = vpop.f32.mrf.mxu0
        %v461 = vadd.f32 0.0, %v460
        %462 = vmatmul.f32.gmra.mxu0 %v331
        %v463 = vpop.f32.mrf.mxu0
        %v464 = vadd.f32 0.0, %v463
        %465 = vmatmul.f32.gmra.mxu0 %v332
        %v466 = vpop.f32.mrf.mxu0
        %v467 = vadd.f32 0.0, %v466
        %468 = vmatmul.f32.gmra.mxu0 %v333
        %v469 = vpop.f32.mrf.mxu0
        %v470 = vadd.f32 0.0, %v469
        %471 = vmatmul.f32.gmra.mxu0 %v334
        %v472 = vpop.f32.mrf.mxu0
        %v473 = vadd.f32 0.0, %v472
        %474 = vmatmul.f32.gmra.mxu0 %v335
        %v475 = vpop.f32.mrf.mxu0
        %v476 = vadd.f32 0.0, %v475
        %477 = vdwg.mxu0
        %478 = vmatpush.msra.mxu0 %v299
        %479 = vmatpush.msra.mxu0 %v298
        %480 = vmatpush.msra.mxu0 %v297
        %481 = vmatpush.msra.mxu0 %v296
        %482 = vmatpush.msra.mxu0 %v295
        %483 = vmatpush.msra.mxu0 %v294
        %484 = vmatpush.msra.mxu0 %v293
        %485 = vmatpush.msra.mxu0 %v292
        %486 = vmatpush.msra.mxu0 %v291
        %487 = vmatpush.msra.mxu0 %v290
        %488 = vmatpush.msra.mxu0 %v289
        %489 = vmatpush.msra.mxu0 %v288
        %490 = vmatpush.msra.mxu0 %v287
        %491 = vmatpush.msra.mxu0 %v286
        %492 = vmatpush.msra.mxu0 %v285
        %493 = vmatpush.msra.mxu0 %v284
        %494 = vmatmul.f32.gmra.mxu0 %v248
        %v495 = vpop.f32.mrf.mxu0
        %v496 = vadd.f32 %v371, %v495
        %497 = vmatmul.f32.gmra.mxu0 %v249
        %v498 = vpop.f32.mrf.mxu0
        %v499 = vadd.f32 %v374, %v498
        %500 = vmatmul.f32.gmra.mxu0 %v250
        %v501 = vpop.f32.mrf.mxu0
        %v502 = vadd.f32 %v377, %v501
        %503 = vmatmul.f32.gmra.mxu0 %v251
        %v504 = vpop.f32.mrf.mxu0
        %v505 = vadd.f32 %v380, %v504
        %506 = vmatmul.f32.gmra.mxu0 %v252
        %v507 = vpop.f32.mrf.mxu0
        %v508 = vadd.f32 %v383, %v507
        %509 = vmatmul.f32.gmra.mxu0 %v253
        %v510 = vpop.f32.mrf.mxu0
        %v511 = vadd.f32 %v386, %v510
        %512 = vmatmul.f32.gmra.mxu0 %v254
        %v513 = vpop.f32.mrf.mxu0
        %v514 = vadd.f32 %v389, %v513
        %515 = vmatmul.f32.gmra.mxu0 %v255
        %v516 = vpop.f32.mrf.mxu0
        %v517 = vadd.f32 %v392, %v516
        %518 = vmatmul.f32.gmra.mxu0 %v256
        %v519 = vpop.f32.mrf.mxu0
        %v520 = vadd.f32 %v395, %v519
        %521 = vmatmul.f32.gmra.mxu0 %v257
        %v522 = vpop.f32.mrf.mxu0
        %v523 = vadd.f32 %v398, %v522
        %524 = vmatmul.f32.gmra.mxu0 %v258
        %v525 = vpop.f32.mrf.mxu0
        %v526 = vadd.f32 %v401, %v525
        %527 = vmatmul.f32.gmra.mxu0 %v259
        %v528 = vpop.f32.mrf.mxu0
        %v529 = vadd.f32 %v404, %v528
        %530 = vmatmul.f32.gmra.mxu0 %v260
        %v531 = vpop.f32.mrf.mxu0
        %v532 = vadd.f32 %v407, %v531
        %533 = vmatmul.f32.gmra.mxu0 %v261
        %v534 = vpop.f32.mrf.mxu0
        %v535 = vadd.f32 %v410, %v534
        %536 = vmatmul.f32.gmra.mxu0 %v262
        %v537 = vpop.f32.mrf.mxu0
        %v538 = vadd.f32 %v413, %v537
        %539 = vmatmul.f32.gmra.mxu0 %v263
        %v540 = vpop.f32.mrf.mxu0
        %v541 = vadd.f32 %v416, %v540
        %542 = vmatmul.f32.gmra.mxu0 %v264
        %v543 = vpop.f32.mrf.mxu0
        %v544 = vadd.f32 %v419, %v543
        %545 = vmatmul.f32.gmra.mxu0 %v265
        %v546 = vpop.f32.mrf.mxu0
        %v547 = vadd.f32 %v422, %v546
        %548 = vmatmul.f32.gmra.mxu0 %v266
        %v549 = vpop.f32.mrf.mxu0
        %v550 = vadd.f32 %v425, %v549
        %551 = vmatmul.f32.gmra.mxu0 %v267
        %v552 = vpop.f32.mrf.mxu0
        %v553 = vadd.f32 %v428, %v552
        %554 = vmatmul.f32.gmra.mxu0 %v268
        %v555 = vpop.f32.mrf.mxu0
        %v556 = vadd.f32 %v431, %v555
        %557 = vmatmul.f32.gmra.mxu0 %v269
        %v558 = vpop.f32.mrf.mxu0
        %v559 = vadd.f32 %v434, %v558
        %560 = vmatmul.f32.gmra.mxu0 %v270
        %v561 = vpop.f32.mrf.mxu0
        %v562 = vadd.f32 %v437, %v561
        %563 = vmatmul.f32.gmra.mxu0 %v271
        %v564 = vpop.f32.mrf.mxu0
        %v565 = vadd.f32 %v440, %v564
        %566 = vmatmul.f32.gmra.mxu0 %v272
        %v567 = vpop.f32.mrf.mxu0
        %v568 = vadd.f32 %v443, %v567
        %569 = vmatmul.f32.gmra.mxu0 %v273
        %v570 = vpop.f32.mrf.mxu0
        %v571 = vadd.f32 %v446, %v570
        %572 = vmatmul.f32.gmra.mxu0 %v274
        %v573 = vpop.f32.mrf.mxu0
        %v574 = vadd.f32 %v449, %v573
        %575 = vmatmul.f32.gmra.mxu0 %v275
        %v576 = vpop.f32.mrf.mxu0
        %v577 = vadd.f32 %v452, %v576
        %578 = vmatmul.f32.gmra.mxu0 %v276
        %v579 = vpop.f32.mrf.mxu0
        %v580 = vadd.f32 %v455, %v579
        %581 = vmatmul.f32.gmra.mxu0 %v277
        %v582 = vpop.f32.mrf.mxu0
        %v583 = vadd.f32 %v458, %v582
        %584 = vmatmul.f32.gmra.mxu0 %v278
        %v585 = vpop.f32.mrf.mxu0
        %v586 = vadd.f32 %v461, %v585
        %587 = vmatmul.f32.gmra.mxu0 %v279
        %v588 = vpop.f32.mrf.mxu0
        %v589 = vadd.f32 %v464, %v588
        %590 = vmatmul.f32.gmra.mxu0 %v280
        %v591 = vpop.f32.mrf.mxu0
        %v592 = vadd.f32 %v467, %v591
        %593 = vmatmul.f32.gmra.mxu0 %v281
        %v594 = vpop.f32.mrf.mxu0
        %v595 = vadd.f32 %v470, %v594
        %596 = vmatmul.f32.gmra.mxu0 %v282
        %v597 = vpop.f32.mrf.mxu0
        %v598 = vadd.f32 %v473, %v597
        %599 = vmatmul.f32.gmra.mxu0 %v283
        %v600 = vpop.f32.mrf.mxu0
        %v601 = vadd.f32 %v476, %v600
        %602 = vdwg.mxu0
        %v603 = vld [vmem:[%s235 + $0x2] sm:$0xff]
        %v604 = vld [vmem:[%s235 + $0xa] sm:$0xff]
        %v605 = vld [vmem:[%s235 + $0x12] sm:$0xff]
        %v606 = vld [vmem:[%s235 + $0x1a] sm:$0xff]
        %v607 = vld [vmem:[%s235 + $0x22] sm:$0xff]
        %v608 = vld [vmem:[%s235 + $0x2a] sm:$0xff]
        %v609 = vld [vmem:[%s235 + $0x32] sm:$0xff]
        %v610 = vld [vmem:[%s235 + $0x3a] sm:$0xff]
        %v611 = vld [vmem:[%s235 + $0x42] sm:$0xff]
        %v612 = vld [vmem:[%s235 + $0x4a] sm:$0xff]
        %v613 = vld [vmem:[%s235 + $0x52] sm:$0xff]
        %v614 = vld [vmem:[%s235 + $0x5a] sm:$0xff]
        %v615 = vld [vmem:[%s235 + $0x62] sm:$0xff]
        %v616 = vld [vmem:[%s235 + $0x6a] sm:$0xff]
        %v617 = vld [vmem:[%s235 + $0x72] sm:$0xff]
        %v618 = vld [vmem:[%s235 + $0x7a] sm:$0xff]
        %v619 = vld [vmem:[%s235 + $0x82] sm:$0xff]
        %v620 = vld [vmem:[%s235 + $0x8a] sm:$0xff]
        %v621 = vld [vmem:[%s235 + $0x92] sm:$0xff]
        %v622 = vld [vmem:[%s235 + $0x9a] sm:$0xff]
        %v623 = vld [vmem:[%s235 + $0xa2] sm:$0xff]
        %v624 = vld [vmem:[%s235 + $0xaa] sm:$0xff]
        %v625 = vld [vmem:[%s235 + $0xb2] sm:$0xff]
        %v626 = vld [vmem:[%s235 + $0xba] sm:$0xff]
        %v627 = vld [vmem:[%s235 + $0xc2] sm:$0xff]
        %v628 = vld [vmem:[%s235 + $0xca] sm:$0xff]
        %v629 = vld [vmem:[%s235 + $0xd2] sm:$0xff]
        %v630 = vld [vmem:[%s235 + $0xda] sm:$0xff]
        %v631 = vld [vmem:[%s235 + $0xe2] sm:$0xff]
        %v632 = vld [vmem:[%s235 + $0xea] sm:$0xff]
        %v633 = vld [vmem:[%s235 + $0xf2] sm:$0xff]
        %v634 = vld [vmem:[%s235 + $0xfa] sm:$0xff]
        %v635 = vld [vmem:[%s235 + $0x102] sm:$0xff]
        %v636 = vld [vmem:[%s235 + $0x10a] sm:$0xff]
        %v637 = vld [vmem:[%s235 + $0x112] sm:$0xff]
        %v638 = vld [vmem:[%s235 + $0x11a] sm:$0xff]
        %s639 = scalar_lea.vmem %s243, 256
        %v640 = vld [vmem:[%s639] sm:$0xff]
        %v641 = vld [vmem:[%s639 + $0x8] sm:$0xff]
        %v642 = vld [vmem:[%s639 + $0x10] sm:$0xff]
        %v643 = vld [vmem:[%s639 + $0x18] sm:$0xff]
        %v644 = vld [vmem:[%s639 + $0x20] sm:$0xff]
        %v645 = vld [vmem:[%s639 + $0x28] sm:$0xff]
        %v646 = vld [vmem:[%s639 + $0x30] sm:$0xff]
        %v647 = vld [vmem:[%s639 + $0x38] sm:$0xff]
        %v648 = vld [vmem:[%s639 + $0x40] sm:$0xff]
        %v649 = vld [vmem:[%s639 + $0x48] sm:$0xff]
        %v650 = vld [vmem:[%s639 + $0x50] sm:$0xff]
        %v651 = vld [vmem:[%s639 + $0x58] sm:$0xff]
        %v652 = vld [vmem:[%s639 + $0x60] sm:$0xff]
        %v653 = vld [vmem:[%s639 + $0x68] sm:$0xff]
        %v654 = vld [vmem:[%s639 + $0x70] sm:$0xff]
        %v655 = vld [vmem:[%s639 + $0x78] sm:$0xff]
        %656 = vmatpush.msra.mxu0 %v655
        %657 = vmatpush.msra.mxu0 %v654
        %658 = vmatpush.msra.mxu0 %v653
        %659 = vmatpush.msra.mxu0 %v652
        %660 = vmatpush.msra.mxu0 %v651
        %661 = vmatpush.msra.mxu0 %v650
        %662 = vmatpush.msra.mxu0 %v649
        %663 = vmatpush.msra.mxu0 %v648
        %664 = vmatpush.msra.mxu0 %v647
        %665 = vmatpush.msra.mxu0 %v646
        %666 = vmatpush.msra.mxu0 %v645
        %667 = vmatpush.msra.mxu0 %v644
        %668 = vmatpush.msra.mxu0 %v643
        %669 = vmatpush.msra.mxu0 %v642
        %670 = vmatpush.msra.mxu0 %v641
        %671 = vmatpush.msra.mxu0 %v640
        %672 = vmatmul.f32.gmra.mxu0 %v603
        %v673 = vpop.f32.mrf.mxu0
        %v674 = vadd.f32 0.0, %v673
        %675 = vmatmul.f32.gmra.mxu0 %v604
        %v676 = vpop.f32.mrf.mxu0
        %v677 = vadd.f32 0.0, %v676
        %678 = vmatmul.f32.gmra.mxu0 %v605
        %v679 = vpop.f32.mrf.mxu0
        %v680 = vadd.f32 0.0, %v679
        %681 = vmatmul.f32.gmra.mxu0 %v606
        %v682 = vpop.f32.mrf.mxu0
        %v683 = vadd.f32 0.0, %v682
        %684 = vmatmul.f32.gmra.mxu0 %v607
        %v685 = vpop.f32.mrf.mxu0
        %v686 = vadd.f32 0.0, %v685
        %687 = vmatmul.f32.gmra.mxu0 %v608
        %v688 = vpop.f32.mrf.mxu0
        %v689 = vadd.f32 0.0, %v688
        %690 = vmatmul.f32.gmra.mxu0 %v609
        %v691 = vpop.f32.mrf.mxu0
        %v692 = vadd.f32 0.0, %v691
        %693 = vmatmul.f32.gmra.mxu0 %v610
        %v694 = vpop.f32.mrf.mxu0
        %v695 = vadd.f32 0.0, %v694
        %696 = vmatmul.f32.gmra.mxu0 %v611
        %v697 = vpop.f32.mrf.mxu0
        %v698 = vadd.f32 0.0, %v697
        %699 = vmatmul.f32.gmra.mxu0 %v612
        %v700 = vpop.f32.mrf.mxu0
        %v701 = vadd.f32 0.0, %v700
        %702 = vmatmul.f32.gmra.mxu0 %v613
        %v703 = vpop.f32.mrf.mxu0
        %v704 = vadd.f32 0.0, %v703
        %705 = vmatmul.f32.gmra.mxu0 %v614
        %v706 = vpop.f32.mrf.mxu0
        %v707 = vadd.f32 0.0, %v706
        %708 = vmatmul.f32.gmra.mxu0 %v615
        %v709 = vpop.f32.mrf.mxu0
        %v710 = vadd.f32 0.0, %v709
        %711 = vmatmul.f32.gmra.mxu0 %v616
        %v712 = vpop.f32.mrf.mxu0
        %v713 = vadd.f32 0.0, %v712
        %714 = vmatmul.f32.gmra.mxu0 %v617
        %v715 = vpop.f32.mrf.mxu0
        %v716 = vadd.f32 0.0, %v715
        %717 = vmatmul.f32.gmra.mxu0 %v618
        %v718 = vpop.f32.mrf.mxu0
        %v719 = vadd.f32 0.0, %v718
        %720 = vmatmul.f32.gmra.mxu0 %v619
        %v721 = vpop.f32.mrf.mxu0
        %v722 = vadd.f32 0.0, %v721
        %723 = vmatmul.f32.gmra.mxu0 %v620
        %v724 = vpop.f32.mrf.mxu0
        %v725 = vadd.f32 0.0, %v724
        %726 = vmatmul.f32.gmra.mxu0 %v621
        %v727 = vpop.f32.mrf.mxu0
        %v728 = vadd.f32 0.0, %v727
        %729 = vmatmul.f32.gmra.mxu0 %v622
        %v730 = vpop.f32.mrf.mxu0
        %v731 = vadd.f32 0.0, %v730
        %732 = vmatmul.f32.gmra.mxu0 %v623
        %v733 = vpop.f32.mrf.mxu0
        %v734 = vadd.f32 0.0, %v733
        %735 = vmatmul.f32.gmra.mxu0 %v624
        %v736 = vpop.f32.mrf.mxu0
        %v737 = vadd.f32 0.0, %v736
        %738 = vmatmul.f32.gmra.mxu0 %v625
        %v739 = vpop.f32.mrf.mxu0
        %v740 = vadd.f32 0.0, %v739
        %741 = vmatmul.f32.gmra.mxu0 %v626
        %v742 = vpop.f32.mrf.mxu0
        %v743 = vadd.f32 0.0, %v742
        %744 = vmatmul.f32.gmra.mxu0 %v627
        %v745 = vpop.f32.mrf.mxu0
        %v746 = vadd.f32 0.0, %v745
        %747 = vmatmul.f32.gmra.mxu0 %v628
        %v748 = vpop.f32.mrf.mxu0
        %v749 = vadd.f32 0.0, %v748
        %750 = vmatmul.f32.gmra.mxu0 %v629
        %v751 = vpop.f32.mrf.mxu0
        %v752 = vadd.f32 0.0, %v751
        %753 = vmatmul.f32.gmra.mxu0 %v630
        %v754 = vpop.f32.mrf.mxu0
        %v755 = vadd.f32 0.0, %v754
        %756 = vmatmul.f32.gmra.mxu0 %v631
        %v757 = vpop.f32.mrf.mxu0
        %v758 = vadd.f32 0.0, %v757
        %759 = vmatmul.f32.gmra.mxu0 %v632
        %v760 = vpop.f32.mrf.mxu0
        %v761 = vadd.f32 0.0, %v760
        %762 = vmatmul.f32.gmra.mxu0 %v633
        %v763 = vpop.f32.mrf.mxu0
        %v764 = vadd.f32 0.0, %v763
        %765 = vmatmul.f32.gmra.mxu0 %v634
        %v766 = vpop.f32.mrf.mxu0
        %v767 = vadd.f32 0.0, %v766
        %768 = vmatmul.f32.gmra.mxu0 %v635
        %v769 = vpop.f32.mrf.mxu0
        %v770 = vadd.f32 0.0, %v769
        %771 = vmatmul.f32.gmra.mxu0 %v636
        %v772 = vpop.f32.mrf.mxu0
        %v773 = vadd.f32 0.0, %v772
        %774 = vmatmul.f32.gmra.mxu0 %v637
        %v775 = vpop.f32.mrf.mxu0
        %v776 = vadd.f32 0.0, %v775
        %777 = vmatmul.f32.gmra.mxu0 %v638
        %v778 = vpop.f32.mrf.mxu0
        %v779 = vadd.f32 0.0, %v778
        %780 = vdwg.mxu0
        %v781 = vadd.f32 %v496, %v674
        %v782 = vadd.f32 %v499, %v677
        %v783 = vadd.f32 %v502, %v680
        %v784 = vadd.f32 %v505, %v683
        %v785 = vadd.f32 %v508, %v686
        %v786 = vadd.f32 %v511, %v689
        %v787 = vadd.f32 %v514, %v692
        %v788 = vadd.f32 %v517, %v695
        %v789 = vadd.f32 %v520, %v698
        %v790 = vadd.f32 %v523, %v701
        %v791 = vadd.f32 %v526, %v704
        %v792 = vadd.f32 %v529, %v707
        %v793 = vadd.f32 %v532, %v710
        %v794 = vadd.f32 %v535, %v713
        %v795 = vadd.f32 %v538, %v716
        %v796 = vadd.f32 %v541, %v719
        %v797 = vadd.f32 %v544, %v722
        %v798 = vadd.f32 %v547, %v725
        %v799 = vadd.f32 %v550, %v728
        %v800 = vadd.f32 %v553, %v731
        %v801 = vadd.f32 %v556, %v734
        %v802 = vadd.f32 %v559, %v737
        %v803 = vadd.f32 %v562, %v740
        %v804 = vadd.f32 %v565, %v743
        %v805 = vadd.f32 %v568, %v746
        %v806 = vadd.f32 %v571, %v749
        %v807 = vadd.f32 %v574, %v752
        %v808 = vadd.f32 %v577, %v755
        %v809 = vadd.f32 %v580, %v758
        %v810 = vadd.f32 %v583, %v761
        %v811 = vadd.f32 %v586, %v764
        %v812 = vadd.f32 %v589, %v767
        %v813 = vadd.f32 %v592, %v770
        %v814 = vadd.f32 %v595, %v773
        %v815 = vadd.f32 %v598, %v776
        %v816 = vadd.f32 %v601, %v779
        %v817 = vld [vmem:[%s235 + $0x12] sm:$0xff]
        %v818 = vld [vmem:[%s235 + $0x1a] sm:$0xff]
        %v819 = vld [vmem:[%s235 + $0x22] sm:$0xff]
        %v820 = vld [vmem:[%s235 + $0x2a] sm:$0xff]
        %v821 = vld [vmem:[%s235 + $0x32] sm:$0xff]
        %v822 = vld [vmem:[%s235 + $0x3a] sm:$0xff]
        %v823 = vld [vmem:[%s235 + $0x42] sm:$0xff]
        %v824 = vld [vmem:[%s235 + $0x4a] sm:$0xff]
        %v825 = vld [vmem:[%s235 + $0x52] sm:$0xff]
        %v826 = vld [vmem:[%s235 + $0x5a] sm:$0xff]
        %v827 = vld [vmem:[%s235 + $0x62] sm:$0xff]
        %v828 = vld [vmem:[%s235 + $0x6a] sm:$0xff]
        %v829 = vld [vmem:[%s235 + $0x72] sm:$0xff]
        %v830 = vld [vmem:[%s235 + $0x7a] sm:$0xff]
        %v831 = vld [vmem:[%s235 + $0x82] sm:$0xff]
        %v832 = vld [vmem:[%s235 + $0x8a] sm:$0xff]
        %v833 = vld [vmem:[%s235 + $0x92] sm:$0xff]
        %v834 = vld [vmem:[%s235 + $0x9a] sm:$0xff]
        %v835 = vld [vmem:[%s235 + $0xa2] sm:$0xff]
        %v836 = vld [vmem:[%s235 + $0xaa] sm:$0xff]
        %v837 = vld [vmem:[%s235 + $0xb2] sm:$0xff]
        %v838 = vld [vmem:[%s235 + $0xba] sm:$0xff]
        %v839 = vld [vmem:[%s235 + $0xc2] sm:$0xff]
        %v840 = vld [vmem:[%s235 + $0xca] sm:$0xff]
        %v841 = vld [vmem:[%s235 + $0xd2] sm:$0xff]
        %v842 = vld [vmem:[%s235 + $0xda] sm:$0xff]
        %v843 = vld [vmem:[%s235 + $0xe2] sm:$0xff]
        %v844 = vld [vmem:[%s235 + $0xea] sm:$0xff]
        %v845 = vld [vmem:[%s235 + $0xf2] sm:$0xff]
        %v846 = vld [vmem:[%s235 + $0xfa] sm:$0xff]
        %v847 = vld [vmem:[%s235 + $0x102] sm:$0xff]
        %v848 = vld [vmem:[%s235 + $0x10a] sm:$0xff]
        %v849 = vld [vmem:[%s235 + $0x112] sm:$0xff]
        %v850 = vld [vmem:[%s235 + $0x11a] sm:$0xff]
        %v851 = vld [vmem:[%s235 + $0x122] sm:$0xff]
        %v852 = vld [vmem:[%s235 + $0x12a] sm:$0xff]
        %s853 = scalar_lea.vmem %s243, 384
        %v854 = vld [vmem:[%s853] sm:$0xff]
        %v855 = vld [vmem:[%s853 + $0x8] sm:$0xff]
        %v856 = vld [vmem:[%s853 + $0x10] sm:$0xff]
        %v857 = vld [vmem:[%s853 + $0x18] sm:$0xff]
        %v858 = vld [vmem:[%s853 + $0x20] sm:$0xff]
        %v859 = vld [vmem:[%s853 + $0x28] sm:$0xff]
        %v860 = vld [vmem:[%s853 + $0x30] sm:$0xff]
        %v861 = vld [vmem:[%s853 + $0x38] sm:$0xff]
        %v862 = vld [vmem:[%s853 + $0x40] sm:$0xff]
        %v863 = vld [vmem:[%s853 + $0x48] sm:$0xff]
        %v864 = vld [vmem:[%s853 + $0x50] sm:$0xff]
        %v865 = vld [vmem:[%s853 + $0x58] sm:$0xff]
        %v866 = vld [vmem:[%s853 + $0x60] sm:$0xff]
        %v867 = vld [vmem:[%s853 + $0x68] sm:$0xff]
        %v868 = vld [vmem:[%s853 + $0x70] sm:$0xff]
        %v869 = vld [vmem:[%s853 + $0x78] sm:$0xff]
        %870 = vmatpush.msra.mxu0 %v869
        %871 = vmatpush.msra.mxu0 %v868
        %872 = vmatpush.msra.mxu0 %v867
        %873 = vmatpush.msra.mxu0 %v866
        %874 = vmatpush.msra.mxu0 %v865
        %875 = vmatpush.msra.mxu0 %v864
        %876 = vmatpush.msra.mxu0 %v863
        %877 = vmatpush.msra.mxu0 %v862
        %878 = vmatpush.msra.mxu0 %v861
        %879 = vmatpush.msra.mxu0 %v860
        %880 = vmatpush.msra.mxu0 %v859
        %881 = vmatpush.msra.mxu0 %v858
        %882 = vmatpush.msra.mxu0 %v857
        %883 = vmatpush.msra.mxu0 %v856
        %884 = vmatpush.msra.mxu0 %v855
        %885 = vmatpush.msra.mxu0 %v854
        %886 = vmatmul.f32.gmra.mxu0 %v817
        %v887 = vpop.f32.mrf.mxu0
        %v888 = vadd.f32 0.0, %v887
        %889 = vmatmul.f32.gmra.mxu0 %v818
        %v890 = vpop.f32.mrf.mxu0
        %v891 = vadd.f32 0.0, %v890
        %892 = vmatmul.f32.gmra.mxu0 %v819
        %v893 = vpop.f32.mrf.mxu0
        %v894 = vadd.f32 0.0, %v893
        %895 = vmatmul.f32.gmra.mxu0 %v820
        %v896 = vpop.f32.mrf.mxu0
        %v897 = vadd.f32 0.0, %v896
        %898 = vmatmul.f32.gmra.mxu0 %v821
        %v899 = vpop.f32.mrf.mxu0
        %v900 = vadd.f32 0.0, %v899
        %901 = vmatmul.f32.gmra.mxu0 %v822
        %v902 = vpop.f32.mrf.mxu0
        %v903 = vadd.f32 0.0, %v902
        %904 = vmatmul.f32.gmra.mxu0 %v823
        %v905 = vpop.f32.mrf.mxu0
        %v906 = vadd.f32 0.0, %v905
        %907 = vmatmul.f32.gmra.mxu0 %v824
        %v908 = vpop.f32.mrf.mxu0
        %v909 = vadd.f32 0.0, %v908
        %910 = vmatmul.f32.gmra.mxu0 %v825
        %v911 = vpop.f32.mrf.mxu0
        %v912 = vadd.f32 0.0, %v911
        %913 = vmatmul.f32.gmra.mxu0 %v826
        %v914 = vpop.f32.mrf.mxu0
        %v915 = vadd.f32 0.0, %v914
        %916 = vmatmul.f32.gmra.mxu0 %v827
        %v917 = vpop.f32.mrf.mxu0
        %v918 = vadd.f32 0.0, %v917
        %919 = vmatmul.f32.gmra.mxu0 %v828
        %v920 = vpop.f32.mrf.mxu0
        %v921 = vadd.f32 0.0, %v920
        %922 = vmatmul.f32.gmra.mxu0 %v829
        %v923 = vpop.f32.mrf.mxu0
        %v924 = vadd.f32 0.0, %v923
        %925 = vmatmul.f32.gmra.mxu0 %v830
        %v926 = vpop.f32.mrf.mxu0
        %v927 = vadd.f32 0.0, %v926
        %928 = vmatmul.f32.gmra.mxu0 %v831
        %v929 = vpop.f32.mrf.mxu0
        %v930 = vadd.f32 0.0, %v929
        %931 = vmatmul.f32.gmra.mxu0 %v832
        %v932 = vpop.f32.mrf.mxu0
        %v933 = vadd.f32 0.0, %v932
        %934 = vmatmul.f32.gmra.mxu0 %v833
        %v935 = vpop.f32.mrf.mxu0
        %v936 = vadd.f32 0.0, %v935
        %937 = vmatmul.f32.gmra.mxu0 %v834
        %v938 = vpop.f32.mrf.mxu0
        %v939 = vadd.f32 0.0, %v938
        %940 = vmatmul.f32.gmra.mxu0 %v835
        %v941 = vpop.f32.mrf.mxu0
        %v942 = vadd.f32 0.0, %v941
        %943 = vmatmul.f32.gmra.mxu0 %v836
        %v944 = vpop.f32.mrf.mxu0
        %v945 = vadd.f32 0.0, %v944
        %946 = vmatmul.f32.gmra.mxu0 %v837
        %v947 = vpop.f32.mrf.mxu0
        %v948 = vadd.f32 0.0, %v947
        %949 = vmatmul.f32.gmra.mxu0 %v838
        %v950 = vpop.f32.mrf.mxu0
        %v951 = vadd.f32 0.0, %v950
        %952 = vmatmul.f32.gmra.mxu0 %v839
        %v953 = vpop.f32.mrf.mxu0
        %v954 = vadd.f32 0.0, %v953
        %955 = vmatmul.f32.gmra.mxu0 %v840
        %v956 = vpop.f32.mrf.mxu0
        %v957 = vadd.f32 0.0, %v956
        %958 = vmatmul.f32.gmra.mxu0 %v841
        %v959 = vpop.f32.mrf.mxu0
        %v960 = vadd.f32 0.0, %v959
        %961 = vmatmul.f32.gmra.mxu0 %v842
        %v962 = vpop.f32.mrf.mxu0
        %v963 = vadd.f32 0.0, %v962
        %964 = vmatmul.f32.gmra.mxu0 %v843
        %v965 = vpop.f32.mrf.mxu0
        %v966 = vadd.f32 0.0, %v965
        %967 = vmatmul.f32.gmra.mxu0 %v844
        %v968 = vpop.f32.mrf.mxu0
        %v969 = vadd.f32 0.0, %v968
        %970 = vmatmul.f32.gmra.mxu0 %v845
        %v971 = vpop.f32.mrf.mxu0
        %v972 = vadd.f32 0.0, %v971
        %973 = vmatmul.f32.gmra.mxu0 %v846
        %v974 = vpop.f32.mrf.mxu0
        %v975 = vadd.f32 0.0, %v974
        %976 = vmatmul.f32.gmra.mxu0 %v847
        %v977 = vpop.f32.mrf.mxu0
        %v978 = vadd.f32 0.0, %v977
        %979 = vmatmul.f32.gmra.mxu0 %v848
        %v980 = vpop.f32.mrf.mxu0
        %v981 = vadd.f32 0.0, %v980
        %982 = vmatmul.f32.gmra.mxu0 %v849
        %v983 = vpop.f32.mrf.mxu0
        %v984 = vadd.f32 0.0, %v983
        %985 = vmatmul.f32.gmra.mxu0 %v850
        %v986 = vpop.f32.mrf.mxu0
        %v987 = vadd.f32 0.0, %v986
        %988 = vmatmul.f32.gmra.mxu0 %v851
        %v989 = vpop.f32.mrf.mxu0
        %v990 = vadd.f32 0.0, %v989
        %991 = vmatmul.f32.gmra.mxu0 %v852
        %v992 = vpop.f32.mrf.mxu0
        %v993 = vadd.f32 0.0, %v992
        %994 = vdwg.mxu0
        %v995 = vadd.f32 %v781, %v888
        %v996 = vadd.f32 %v782, %v891
        %v997 = vadd.f32 %v783, %v894
        %v998 = vadd.f32 %v784, %v897
        %v999 = vadd.f32 %v785, %v900
        %v1000 = vadd.f32 %v786, %v903
        %v1001 = vadd.f32 %v787, %v906
        %v1002 = vadd.f32 %v788, %v909
        %v1003 = vadd.f32 %v789, %v912
        %v1004 = vadd.f32 %v790, %v915
        %v1005 = vadd.f32 %v791, %v918
        %v1006 = vadd.f32 %v792, %v921
        %v1007 = vadd.f32 %v793, %v924
        %v1008 = vadd.f32 %v794, %v927
        %v1009 = vadd.f32 %v795, %v930
        %v1010 = vadd.f32 %v796, %v933
        %v1011 = vadd.f32 %v797, %v936
        %v1012 = vadd.f32 %v798, %v939
        %v1013 = vadd.f32 %v799, %v942
        %v1014 = vadd.f32 %v800, %v945
        %v1015 = vadd.f32 %v801, %v948
        %v1016 = vadd.f32 %v802, %v951
        %v1017 = vadd.f32 %v803, %v954
        %v1018 = vadd.f32 %v804, %v957
        %v1019 = vadd.f32 %v805, %v960
        %v1020 = vadd.f32 %v806, %v963
        %v1021 = vadd.f32 %v807, %v966
        %v1022 = vadd.f32 %v808, %v969
        %v1023 = vadd.f32 %v809, %v972
        %v1024 = vadd.f32 %v810, %v975
        %v1025 = vadd.f32 %v811, %v978
        %v1026 = vadd.f32 %v812, %v981
        %v1027 = vadd.f32 %v813, %v984
        %v1028 = vadd.f32 %v814, %v987
        %v1029 = vadd.f32 %v815, %v990
        %v1030 = vadd.f32 %v816, %v993
        %v1031 = vld [vmem:[%s235 + $0x13] sm:$0xff]
        %v1032 = vld [vmem:[%s235 + $0x1b] sm:$0xff]
        %v1033 = vld [vmem:[%s235 + $0x23] sm:$0xff]
        %v1034 = vld [vmem:[%s235 + $0x2b] sm:$0xff]
        %v1035 = vld [vmem:[%s235 + $0x33] sm:$0xff]
        %v1036 = vld [vmem:[%s235 + $0x3b] sm:$0xff]
        %v1037 = vld [vmem:[%s235 + $0x43] sm:$0xff]
        %v1038 = vld [vmem:[%s235 + $0x4b] sm:$0xff]
        %v1039 = vld [vmem:[%s235 + $0x53] sm:$0xff]
        %v1040 = vld [vmem:[%s235 + $0x5b] sm:$0xff]
        %v1041 = vld [vmem:[%s235 + $0x63] sm:$0xff]
        %v1042 = vld [vmem:[%s235 + $0x6b] sm:$0xff]
        %v1043 = vld [vmem:[%s235 + $0x73] sm:$0xff]
        %v1044 = vld [vmem:[%s235 + $0x7b] sm:$0xff]
        %v1045 = vld [vmem:[%s235 + $0x83] sm:$0xff]
        %v1046 = vld [vmem:[%s235 + $0x8b] sm:$0xff]
        %v1047 = vld [vmem:[%s235 + $0x93] sm:$0xff]
        %v1048 = vld [vmem:[%s235 + $0x9b] sm:$0xff]
        %v1049 = vld [vmem:[%s235 + $0xa3] sm:$0xff]
        %v1050 = vld [vmem:[%s235 + $0xab] sm:$0xff]
        %v1051 = vld [vmem:[%s235 + $0xb3] sm:$0xff]
        %v1052 = vld [vmem:[%s235 + $0xbb] sm:$0xff]
        %v1053 = vld [vmem:[%s235 + $0xc3] sm:$0xff]
        %v1054 = vld [vmem:[%s235 + $0xcb] sm:$0xff]
        %v1055 = vld [vmem:[%s235 + $0xd3] sm:$0xff]
        %v1056 = vld [vmem:[%s235 + $0xdb] sm:$0xff]
        %v1057 = vld [vmem:[%s235 + $0xe3] sm:$0xff]
        %v1058 = vld [vmem:[%s235 + $0xeb] sm:$0xff]
        %v1059 = vld [vmem:[%s235 + $0xf3] sm:$0xff]
        %v1060 = vld [vmem:[%s235 + $0xfb] sm:$0xff]
        %v1061 = vld [vmem:[%s235 + $0x103] sm:$0xff]
        %v1062 = vld [vmem:[%s235 + $0x10b] sm:$0xff]
        %v1063 = vld [vmem:[%s235 + $0x113] sm:$0xff]
        %v1064 = vld [vmem:[%s235 + $0x11b] sm:$0xff]
        %v1065 = vld [vmem:[%s235 + $0x123] sm:$0xff]
        %v1066 = vld [vmem:[%s235 + $0x12b] sm:$0xff]
        %s1067 = scalar_lea.vmem %s243, 512
        %v1068 = vld [vmem:[%s1067] sm:$0xff]
        %v1069 = vld [vmem:[%s1067 + $0x8] sm:$0xff]
        %v1070 = vld [vmem:[%s1067 + $0x10] sm:$0xff]
        %v1071 = vld [vmem:[%s1067 + $0x18] sm:$0xff]
        %v1072 = vld [vmem:[%s1067 + $0x20] sm:$0xff]
        %v1073 = vld [vmem:[%s1067 + $0x28] sm:$0xff]
        %v1074 = vld [vmem:[%s1067 + $0x30] sm:$0xff]
        %v1075 = vld [vmem:[%s1067 + $0x38] sm:$0xff]
        %v1076 = vld [vmem:[%s1067 + $0x40] sm:$0xff]
        %v1077 = vld [vmem:[%s1067 + $0x48] sm:$0xff]
        %v1078 = vld [vmem:[%s1067 + $0x50] sm:$0xff]
        %v1079 = vld [vmem:[%s1067 + $0x58] sm:$0xff]
        %v1080 = vld [vmem:[%s1067 + $0x60] sm:$0xff]
        %v1081 = vld [vmem:[%s1067 + $0x68] sm:$0xff]
        %v1082 = vld [vmem:[%s1067 + $0x70] sm:$0xff]
        %v1083 = vld [vmem:[%s1067 + $0x78] sm:$0xff]
        %1084 = vmatpush.msra.mxu0 %v1083
        %1085 = vmatpush.msra.mxu0 %v1082
        %1086 = vmatpush.msra.mxu0 %v1081
        %1087 = vmatpush.msra.mxu0 %v1080
        %1088 = vmatpush.msra.mxu0 %v1079
        %1089 = vmatpush.msra.mxu0 %v1078
        %1090 = vmatpush.msra.mxu0 %v1077
        %1091 = vmatpush.msra.mxu0 %v1076
        %1092 = vmatpush.msra.mxu0 %v1075
        %1093 = vmatpush.msra.mxu0 %v1074
        %1094 = vmatpush.msra.mxu0 %v1073
        %1095 = vmatpush.msra.mxu0 %v1072
        %1096 = vmatpush.msra.mxu0 %v1071
        %1097 = vmatpush.msra.mxu0 %v1070
        %1098 = vmatpush.msra.mxu0 %v1069
        %1099 = vmatpush.msra.mxu0 %v1068
        %1100 = vmatmul.f32.gmra.mxu0 %v1031
        %v1101 = vpop.f32.mrf.mxu0
        %v1102 = vadd.f32 0.0, %v1101
        %1103 = vmatmul.f32.gmra.mxu0 %v1032
        %v1104 = vpop.f32.mrf.mxu0
        %v1105 = vadd.f32 0.0, %v1104
        %1106 = vmatmul.f32.gmra.mxu0 %v1033
        %v1107 = vpop.f32.mrf.mxu0
        %v1108 = vadd.f32 0.0, %v1107
        %1109 = vmatmul.f32.gmra.mxu0 %v1034
        %v1110 = vpop.f32.mrf.mxu0
        %v1111 = vadd.f32 0.0, %v1110
        %1112 = vmatmul.f32.gmra.mxu0 %v1035
        %v1113 = vpop.f32.mrf.mxu0
        %v1114 = vadd.f32 0.0, %v1113
        %1115 = vmatmul.f32.gmra.mxu0 %v1036
        %v1116 = vpop.f32.mrf.mxu0
        %v1117 = vadd.f32 0.0, %v1116
        %1118 = vmatmul.f32.gmra.mxu0 %v1037
        %v1119 = vpop.f32.mrf.mxu0
        %v1120 = vadd.f32 0.0, %v1119
        %1121 = vmatmul.f32.gmra.mxu0 %v1038
        %v1122 = vpop.f32.mrf.mxu0
        %v1123 = vadd.f32 0.0, %v1122
        %1124 = vmatmul.f32.gmra.mxu0 %v1039
        %v1125 = vpop.f32.mrf.mxu0
        %v1126 = vadd.f32 0.0, %v1125
        %1127 = vmatmul.f32.gmra.mxu0 %v1040
        %v1128 = vpop.f32.mrf.mxu0
        %v1129 = vadd.f32 0.0, %v1128
        %1130 = vmatmul.f32.gmra.mxu0 %v1041
        %v1131 = vpop.f32.mrf.mxu0
        %v1132 = vadd.f32 0.0, %v1131
        %1133 = vmatmul.f32.gmra.mxu0 %v1042
        %v1134 = vpop.f32.mrf.mxu0
        %v1135 = vadd.f32 0.0, %v1134
        %1136 = vmatmul.f32.gmra.mxu0 %v1043
        %v1137 = vpop.f32.mrf.mxu0
        %v1138 = vadd.f32 0.0, %v1137
        %1139 = vmatmul.f32.gmra.mxu0 %v1044
        %v1140 = vpop.f32.mrf.mxu0
        %v1141 = vadd.f32 0.0, %v1140
        %1142 = vmatmul.f32.gmra.mxu0 %v1045
        %v1143 = vpop.f32.mrf.mxu0
        %v1144 = vadd.f32 0.0, %v1143
        %1145 = vmatmul.f32.gmra.mxu0 %v1046
        %v1146 = vpop.f32.mrf.mxu0
        %v1147 = vadd.f32 0.0, %v1146
        %1148 = vmatmul.f32.gmra.mxu0 %v1047
        %v1149 = vpop.f32.mrf.mxu0
        %v1150 = vadd.f32 0.0, %v1149
        %1151 = vmatmul.f32.gmra.mxu0 %v1048
        %v1152 = vpop.f32.mrf.mxu0
        %v1153 = vadd.f32 0.0, %v1152
        %1154 = vmatmul.f32.gmra.mxu0 %v1049
        %v1155 = vpop.f32.mrf.mxu0
        %v1156 = vadd.f32 0.0, %v1155
        %1157 = vmatmul.f32.gmra.mxu0 %v1050
        %v1158 = vpop.f32.mrf.mxu0
        %v1159 = vadd.f32 0.0, %v1158
        %1160 = vmatmul.f32.gmra.mxu0 %v1051
        %v1161 = vpop.f32.mrf.mxu0
        %v1162 = vadd.f32 0.0, %v1161
        %1163 = vmatmul.f32.gmra.mxu0 %v1052
        %v1164 = vpop.f32.mrf.mxu0
        %v1165 = vadd.f32 0.0, %v1164
        %1166 = vmatmul.f32.gmra.mxu0 %v1053
        %v1167 = vpop.f32.mrf.mxu0
        %v1168 = vadd.f32 0.0, %v1167
        %1169 = vmatmul.f32.gmra.mxu0 %v1054
        %v1170 = vpop.f32.mrf.mxu0
        %v1171 = vadd.f32 0.0, %v1170
        %1172 = vmatmul.f32.gmra.mxu0 %v1055
        %v1173 = vpop.f32.mrf.mxu0
        %v1174 = vadd.f32 0.0, %v1173
        %1175 = vmatmul.f32.gmra.mxu0 %v1056
        %v1176 = vpop.f32.mrf.mxu0
        %v1177 = vadd.f32 0.0, %v1176
        %1178 = vmatmul.f32.gmra.mxu0 %v1057
        %v1179 = vpop.f32.mrf.mxu0
        %v1180 = vadd.f32 0.0, %v1179
        %1181 = vmatmul.f32.gmra.mxu0 %v1058
        %v1182 = vpop.f32.mrf.mxu0
        %v1183 = vadd.f32 0.0, %v1182
        %1184 = vmatmul.f32.gmra.mxu0 %v1059
        %v1185 = vpop.f32.mrf.mxu0
        %v1186 = vadd.f32 0.0, %v1185
        %1187 = vmatmul.f32.gmra.mxu0 %v1060
        %v1188 = vpop.f32.mrf.mxu0
        %v1189 = vadd.f32 0.0, %v1188
        %1190 = vmatmul.f32.gmra.mxu0 %v1061
        %v1191 = vpop.f32.mrf.mxu0
        %v1192 = vadd.f32 0.0, %v1191
        %1193 = vmatmul.f32.gmra.mxu0 %v1062
        %v1194 = vpop.f32.mrf.mxu0
        %v1195 = vadd.f32 0.0, %v1194
        %1196 = vmatmul.f32.gmra.mxu0 %v1063
        %v1197 = vpop.f32.mrf.mxu0
        %v1198 = vadd.f32 0.0, %v1197
        %1199 = vmatmul.f32.gmra.mxu0 %v1064
        %v1200 = vpop.f32.mrf.mxu0
        %v1201 = vadd.f32 0.0, %v1200
        %1202 = vmatmul.f32.gmra.mxu0 %v1065
        %v1203 = vpop.f32.mrf.mxu0
        %v1204 = vadd.f32 0.0, %v1203
        %1205 = vmatmul.f32.gmra.mxu0 %v1066
        %v1206 = vpop.f32.mrf.mxu0
        %v1207 = vadd.f32 0.0, %v1206
        %1208 = vdwg.mxu0
        %v1209 = vadd.f32 %v995, %v1102
        %v1210 = vadd.f32 %v996, %v1105
        %v1211 = vadd.f32 %v997, %v1108
        %v1212 = vadd.f32 %v998, %v1111
        %v1213 = vadd.f32 %v999, %v1114
        %v1214 = vadd.f32 %v1000, %v1117
        %v1215 = vadd.f32 %v1001, %v1120
        %v1216 = vadd.f32 %v1002, %v1123
        %v1217 = vadd.f32 %v1003, %v1126
        %v1218 = vadd.f32 %v1004, %v1129
        %v1219 = vadd.f32 %v1005, %v1132
        %v1220 = vadd.f32 %v1006, %v1135
        %v1221 = vadd.f32 %v1007, %v1138
        %v1222 = vadd.f32 %v1008, %v1141
        %v1223 = vadd.f32 %v1009, %v1144
        %v1224 = vadd.f32 %v1010, %v1147
        %v1225 = vadd.f32 %v1011, %v1150
        %v1226 = vadd.f32 %v1012, %v1153
        %v1227 = vadd.f32 %v1013, %v1156
        %v1228 = vadd.f32 %v1014, %v1159
        %v1229 = vadd.f32 %v1015, %v1162
        %v1230 = vadd.f32 %v1016, %v1165
        %v1231 = vadd.f32 %v1017, %v1168
        %v1232 = vadd.f32 %v1018, %v1171
        %v1233 = vadd.f32 %v1019, %v1174
        %v1234 = vadd.f32 %v1020, %v1177
        %v1235 = vadd.f32 %v1021, %v1180
        %v1236 = vadd.f32 %v1022, %v1183
        %v1237 = vadd.f32 %v1023, %v1186
        %v1238 = vadd.f32 %v1024, %v1189
        %v1239 = vadd.f32 %v1025, %v1192
        %v1240 = vadd.f32 %v1026, %v1195
        %v1241 = vadd.f32 %v1027, %v1198
        %v1242 = vadd.f32 %v1028, %v1201
        %v1243 = vadd.f32 %v1029, %v1204
        %v1244 = vadd.f32 %v1030, %v1207
        %v1245 = vld [vmem:[%s235 + $0x14] sm:$0xff]
        %v1246 = vld [vmem:[%s235 + $0x1c] sm:$0xff]
        %v1247 = vld [vmem:[%s235 + $0x24] sm:$0xff]
        %v1248 = vld [vmem:[%s235 + $0x2c] sm:$0xff]
        %v1249 = vld [vmem:[%s235 + $0x34] sm:$0xff]
        %v1250 = vld [vmem:[%s235 + $0x3c] sm:$0xff]
        %v1251 = vld [vmem:[%s235 + $0x44] sm:$0xff]
        %v1252 = vld [vmem:[%s235 + $0x4c] sm:$0xff]
        %v1253 = vld [vmem:[%s235 + $0x54] sm:$0xff]
        %v1254 = vld [vmem:[%s235 + $0x5c] sm:$0xff]
        %v1255 = vld [vmem:[%s235 + $0x64] sm:$0xff]
        %v1256 = vld [vmem:[%s235 + $0x6c] sm:$0xff]
        %v1257 = vld [vmem:[%s235 + $0x74] sm:$0xff]
        %v1258 = vld [vmem:[%s235 + $0x7c] sm:$0xff]
        %v1259 = vld [vmem:[%s235 + $0x84] sm:$0xff]
        %v1260 = vld [vmem:[%s235 + $0x8c] sm:$0xff]
        %v1261 = vld [vmem:[%s235 + $0x94] sm:$0xff]
        %v1262 = vld [vmem:[%s235 + $0x9c] sm:$0xff]
        %v1263 = vld [vmem:[%s235 + $0xa4] sm:$0xff]
        %v1264 = vld [vmem:[%s235 + $0xac] sm:$0xff]
        %v1265 = vld [vmem:[%s235 + $0xb4] sm:$0xff]
        %v1266 = vld [vmem:[%s235 + $0xbc] sm:$0xff]
        %v1267 = vld [vmem:[%s235 + $0xc4] sm:$0xff]
        %v1268 = vld [vmem:[%s235 + $0xcc] sm:$0xff]
        %v1269 = vld [vmem:[%s235 + $0xd4] sm:$0xff]
        %v1270 = vld [vmem:[%s235 + $0xdc] sm:$0xff]
        %v1271 = vld [vmem:[%s235 + $0xe4] sm:$0xff]
        %v1272 = vld [vmem:[%s235 + $0xec] sm:$0xff]
        %v1273 = vld [vmem:[%s235 + $0xf4] sm:$0xff]
        %v1274 = vld [vmem:[%s235 + $0xfc] sm:$0xff]
        %v1275 = vld [vmem:[%s235 + $0x104] sm:$0xff]
        %v1276 = vld [vmem:[%s235 + $0x10c] sm:$0xff]
        %v1277 = vld [vmem:[%s235 + $0x114] sm:$0xff]
        %v1278 = vld [vmem:[%s235 + $0x11c] sm:$0xff]
        %v1279 = vld [vmem:[%s235 + $0x124] sm:$0xff]
        %v1280 = vld [vmem:[%s235 + $0x12c] sm:$0xff]
        %s1281 = scalar_lea.vmem %s243, 640
        %v1282 = vld [vmem:[%s1281] sm:$0xff]
        %v1283 = vld [vmem:[%s1281 + $0x8] sm:$0xff]
        %v1284 = vld [vmem:[%s1281 + $0x10] sm:$0xff]
        %v1285 = vld [vmem:[%s1281 + $0x18] sm:$0xff]
        %v1286 = vld [vmem:[%s1281 + $0x20] sm:$0xff]
        %v1287 = vld [vmem:[%s1281 + $0x28] sm:$0xff]
        %v1288 = vld [vmem:[%s1281 + $0x30] sm:$0xff]
        %v1289 = vld [vmem:[%s1281 + $0x38] sm:$0xff]
        %v1290 = vld [vmem:[%s1281 + $0x40] sm:$0xff]
        %v1291 = vld [vmem:[%s1281 + $0x48] sm:$0xff]
        %v1292 = vld [vmem:[%s1281 + $0x50] sm:$0xff]
        %v1293 = vld [vmem:[%s1281 + $0x58] sm:$0xff]
        %v1294 = vld [vmem:[%s1281 + $0x60] sm:$0xff]
        %v1295 = vld [vmem:[%s1281 + $0x68] sm:$0xff]
        %v1296 = vld [vmem:[%s1281 + $0x70] sm:$0xff]
        %v1297 = vld [vmem:[%s1281 + $0x78] sm:$0xff]
        %1298 = vmatpush.msra.mxu0 %v1297
        %1299 = vmatpush.msra.mxu0 %v1296
        %1300 = vmatpush.msra.mxu0 %v1295
        %1301 = vmatpush.msra.mxu0 %v1294
        %1302 = vmatpush.msra.mxu0 %v1293
        %1303 = vmatpush.msra.mxu0 %v1292
        %1304 = vmatpush.msra.mxu0 %v1291
        %1305 = vmatpush.msra.mxu0 %v1290
        %1306 = vmatpush.msra.mxu0 %v1289
        %1307 = vmatpush.msra.mxu0 %v1288
        %1308 = vmatpush.msra.mxu0 %v1287
        %1309 = vmatpush.msra.mxu0 %v1286
        %1310 = vmatpush.msra.mxu0 %v1285
        %1311 = vmatpush.msra.mxu0 %v1284
        %1312 = vmatpush.msra.mxu0 %v1283
        %1313 = vmatpush.msra.mxu0 %v1282
        %1314 = vmatmul.f32.gmra.mxu0 %v1245
        %v1315 = vpop.f32.mrf.mxu0
        %v1316 = vadd.f32 0.0, %v1315
        %1317 = vmatmul.f32.gmra.mxu0 %v1246
        %v1318 = vpop.f32.mrf.mxu0
        %v1319 = vadd.f32 0.0, %v1318
        %1320 = vmatmul.f32.gmra.mxu0 %v1247
        %v1321 = vpop.f32.mrf.mxu0
        %v1322 = vadd.f32 0.0, %v1321
        %1323 = vmatmul.f32.gmra.mxu0 %v1248
        %v1324 = vpop.f32.mrf.mxu0
        %v1325 = vadd.f32 0.0, %v1324
        %1326 = vmatmul.f32.gmra.mxu0 %v1249
        %v1327 = vpop.f32.mrf.mxu0
        %v1328 = vadd.f32 0.0, %v1327
        %1329 = vmatmul.f32.gmra.mxu0 %v1250
        %v1330 = vpop.f32.mrf.mxu0
        %v1331 = vadd.f32 0.0, %v1330
        %1332 = vmatmul.f32.gmra.mxu0 %v1251
        %v1333 = vpop.f32.mrf.mxu0
        %v1334 = vadd.f32 0.0, %v1333
        %1335 = vmatmul.f32.gmra.mxu0 %v1252
        %v1336 = vpop.f32.mrf.mxu0
        %v1337 = vadd.f32 0.0, %v1336
        %1338 = vmatmul.f32.gmra.mxu0 %v1253
        %v1339 = vpop.f32.mrf.mxu0
        %v1340 = vadd.f32 0.0, %v1339
        %1341 = vmatmul.f32.gmra.mxu0 %v1254
        %v1342 = vpop.f32.mrf.mxu0
        %v1343 = vadd.f32 0.0, %v1342
        %1344 = vmatmul.f32.gmra.mxu0 %v1255
        %v1345 = vpop.f32.mrf.mxu0
        %v1346 = vadd.f32 0.0, %v1345
        %1347 = vmatmul.f32.gmra.mxu0 %v1256
        %v1348 = vpop.f32.mrf.mxu0
        %v1349 = vadd.f32 0.0, %v1348
        %1350 = vmatmul.f32.gmra.mxu0 %v1257
        %v1351 = vpop.f32.mrf.mxu0
        %v1352 = vadd.f32 0.0, %v1351
        %1353 = vmatmul.f32.gmra.mxu0 %v1258
        %v1354 = vpop.f32.mrf.mxu0
        %v1355 = vadd.f32 0.0, %v1354
        %1356 = vmatmul.f32.gmra.mxu0 %v1259
        %v1357 = vpop.f32.mrf.mxu0
        %v1358 = vadd.f32 0.0, %v1357
        %1359 = vmatmul.f32.gmra.mxu0 %v1260
        %v1360 = vpop.f32.mrf.mxu0
        %v1361 = vadd.f32 0.0, %v1360
        %1362 = vmatmul.f32.gmra.mxu0 %v1261
        %v1363 = vpop.f32.mrf.mxu0
        %v1364 = vadd.f32 0.0, %v1363
        %1365 = vmatmul.f32.gmra.mxu0 %v1262
        %v1366 = vpop.f32.mrf.mxu0
        %v1367 = vadd.f32 0.0, %v1366
        %1368 = vmatmul.f32.gmra.mxu0 %v1263
        %v1369 = vpop.f32.mrf.mxu0
        %v1370 = vadd.f32 0.0, %v1369
        %1371 = vmatmul.f32.gmra.mxu0 %v1264
        %v1372 = vpop.f32.mrf.mxu0
        %v1373 = vadd.f32 0.0, %v1372
        %1374 = vmatmul.f32.gmra.mxu0 %v1265
        %v1375 = vpop.f32.mrf.mxu0
        %v1376 = vadd.f32 0.0, %v1375
        %1377 = vmatmul.f32.gmra.mxu0 %v1266
        %v1378 = vpop.f32.mrf.mxu0
        %v1379 = vadd.f32 0.0, %v1378
        %1380 = vmatmul.f32.gmra.mxu0 %v1267
        %v1381 = vpop.f32.mrf.mxu0
        %v1382 = vadd.f32 0.0, %v1381
        %1383 = vmatmul.f32.gmra.mxu0 %v1268
        %v1384 = vpop.f32.mrf.mxu0
        %v1385 = vadd.f32 0.0, %v1384
        %1386 = vmatmul.f32.gmra.mxu0 %v1269
        %v1387 = vpop.f32.mrf.mxu0
        %v1388 = vadd.f32 0.0, %v1387
        %1389 = vmatmul.f32.gmra.mxu0 %v1270
        %v1390 = vpop.f32.mrf.mxu0
        %v1391 = vadd.f32 0.0, %v1390
        %1392 = vmatmul.f32.gmra.mxu0 %v1271
        %v1393 = vpop.f32.mrf.mxu0
        %v1394 = vadd.f32 0.0, %v1393
        %1395 = vmatmul.f32.gmra.mxu0 %v1272
        %v1396 = vpop.f32.mrf.mxu0
        %v1397 = vadd.f32 0.0, %v1396
        %1398 = vmatmul.f32.gmra.mxu0 %v1273
        %v1399 = vpop.f32.mrf.mxu0
        %v1400 = vadd.f32 0.0, %v1399
        %1401 = vmatmul.f32.gmra.mxu0 %v1274
        %v1402 = vpop.f32.mrf.mxu0
        %v1403 = vadd.f32 0.0, %v1402
        %1404 = vmatmul.f32.gmra.mxu0 %v1275
        %v1405 = vpop.f32.mrf.mxu0
        %v1406 = vadd.f32 0.0, %v1405
        %1407 = vmatmul.f32.gmra.mxu0 %v1276
        %v1408 = vpop.f32.mrf.mxu0
        %v1409 = vadd.f32 0.0, %v1408
        %1410 = vmatmul.f32.gmra.mxu0 %v1277
        %v1411 = vpop.f32.mrf.mxu0
        %v1412 = vadd.f32 0.0, %v1411
        %1413 = vmatmul.f32.gmra.mxu0 %v1278
        %v1414 = vpop.f32.mrf.mxu0
        %v1415 = vadd.f32 0.0, %v1414
        %1416 = vmatmul.f32.gmra.mxu0 %v1279
        %v1417 = vpop.f32.mrf.mxu0
        %v1418 = vadd.f32 0.0, %v1417
        %1419 = vmatmul.f32.gmra.mxu0 %v1280
        %v1420 = vpop.f32.mrf.mxu0
        %v1421 = vadd.f32 0.0, %v1420
        %1422 = vdwg.mxu0
        %v1423 = vadd.f32 %v1209, %v1316
        %v1424 = vadd.f32 %v1210, %v1319
        %v1425 = vadd.f32 %v1211, %v1322
        %v1426 = vadd.f32 %v1212, %v1325
        %v1427 = vadd.f32 %v1213, %v1328
        %v1428 = vadd.f32 %v1214, %v1331
        %v1429 = vadd.f32 %v1215, %v1334
        %v1430 = vadd.f32 %v1216, %v1337
        %v1431 = vadd.f32 %v1217, %v1340
        %v1432 = vadd.f32 %v1218, %v1343
        %v1433 = vadd.f32 %v1219, %v1346
        %v1434 = vadd.f32 %v1220, %v1349
        %v1435 = vadd.f32 %v1221, %v1352
        %v1436 = vadd.f32 %v1222, %v1355
        %v1437 = vadd.f32 %v1223, %v1358
        %v1438 = vadd.f32 %v1224, %v1361
        %v1439 = vadd.f32 %v1225, %v1364
        %v1440 = vadd.f32 %v1226, %v1367
        %v1441 = vadd.f32 %v1227, %v1370
        %v1442 = vadd.f32 %v1228, %v1373
        %v1443 = vadd.f32 %v1229, %v1376
        %v1444 = vadd.f32 %v1230, %v1379
        %v1445 = vadd.f32 %v1231, %v1382
        %v1446 = vadd.f32 %v1232, %v1385
        %v1447 = vadd.f32 %v1233, %v1388
        %v1448 = vadd.f32 %v1234, %v1391
        %v1449 = vadd.f32 %v1235, %v1394
        %v1450 = vadd.f32 %v1236, %v1397
        %v1451 = vadd.f32 %v1237, %v1400
        %v1452 = vadd.f32 %v1238, %v1403
        %v1453 = vadd.f32 %v1239, %v1406
        %v1454 = vadd.f32 %v1240, %v1409
        %v1455 = vadd.f32 %v1241, %v1412
        %v1456 = vadd.f32 %v1242, %v1415
        %v1457 = vadd.f32 %v1243, %v1418
        %v1458 = vadd.f32 %v1244, %v1421
        %v1459 = vld [vmem:[%s235 + $0x24] sm:$0xff]
        %v1460 = vld [vmem:[%s235 + $0x2c] sm:$0xff]
        %v1461 = vld [vmem:[%s235 + $0x34] sm:$0xff]
        %v1462 = vld [vmem:[%s235 + $0x3c] sm:$0xff]
        %v1463 = vld [vmem:[%s235 + $0x44] sm:$0xff]
        %v1464 = vld [vmem:[%s235 + $0x4c] sm:$0xff]
        %v1465 = vld [vmem:[%s235 + $0x54] sm:$0xff]
        %v1466 = vld [vmem:[%s235 + $0x5c] sm:$0xff]
        %v1467 = vld [vmem:[%s235 + $0x64] sm:$0xff]
        %v1468 = vld [vmem:[%s235 + $0x6c] sm:$0xff]
        %v1469 = vld [vmem:[%s235 + $0x74] sm:$0xff]
        %v1470 = vld [vmem:[%s235 + $0x7c] sm:$0xff]
        %v1471 = vld [vmem:[%s235 + $0x84] sm:$0xff]
        %v1472 = vld [vmem:[%s235 + $0x8c] sm:$0xff]
        %v1473 = vld [vmem:[%s235 + $0x94] sm:$0xff]
        %v1474 = vld [vmem:[%s235 + $0x9c] sm:$0xff]
        %v1475 = vld [vmem:[%s235 + $0xa4] sm:$0xff]
        %v1476 = vld [vmem:[%s235 + $0xac] sm:$0xff]
        %v1477 = vld [vmem:[%s235 + $0xb4] sm:$0xff]
        %v1478 = vld [vmem:[%s235 + $0xbc] sm:$0xff]
        %v1479 = vld [vmem:[%s235 + $0xc4] sm:$0xff]
        %v1480 = vld [vmem:[%s235 + $0xcc] sm:$0xff]
        %v1481 = vld [vmem:[%s235 + $0xd4] sm:$0xff]
        %v1482 = vld [vmem:[%s235 + $0xdc] sm:$0xff]
        %v1483 = vld [vmem:[%s235 + $0xe4] sm:$0xff]
        %v1484 = vld [vmem:[%s235 + $0xec] sm:$0xff]
        %v1485 = vld [vmem:[%s235 + $0xf4] sm:$0xff]
        %v1486 = vld [vmem:[%s235 + $0xfc] sm:$0xff]
        %v1487 = vld [vmem:[%s235 + $0x104] sm:$0xff]
        %v1488 = vld [vmem:[%s235 + $0x10c] sm:$0xff]
        %v1489 = vld [vmem:[%s235 + $0x114] sm:$0xff]
        %v1490 = vld [vmem:[%s235 + $0x11c] sm:$0xff]
        %v1491 = vld [vmem:[%s235 + $0x124] sm:$0xff]
        %v1492 = vld [vmem:[%s235 + $0x12c] sm:$0xff]
        %v1493 = vld [vmem:[%s235 + $0x134] sm:$0xff]
        %v1494 = vld [vmem:[%s235 + $0x13c] sm:$0xff]
        %s1495 = scalar_lea.vmem %s243, 768
        %v1496 = vld [vmem:[%s1495] sm:$0xff]
        %v1497 = vld [vmem:[%s1495 + $0x8] sm:$0xff]
        %v1498 = vld [vmem:[%s1495 + $0x10] sm:$0xff]
        %v1499 = vld [vmem:[%s1495 + $0x18] sm:$0xff]
        %v1500 = vld [vmem:[%s1495 + $0x20] sm:$0xff]
        %v1501 = vld [vmem:[%s1495 + $0x28] sm:$0xff]
        %v1502 = vld [vmem:[%s1495 + $0x30] sm:$0xff]
        %v1503 = vld [vmem:[%s1495 + $0x38] sm:$0xff]
        %v1504 = vld [vmem:[%s1495 + $0x40] sm:$0xff]
        %v1505 = vld [vmem:[%s1495 + $0x48] sm:$0xff]
        %v1506 = vld [vmem:[%s1495 + $0x50] sm:$0xff]
        %v1507 = vld [vmem:[%s1495 + $0x58] sm:$0xff]
        %v1508 = vld [vmem:[%s1495 + $0x60] sm:$0xff]
        %v1509 = vld [vmem:[%s1495 + $0x68] sm:$0xff]
        %v1510 = vld [vmem:[%s1495 + $0x70] sm:$0xff]
        %v1511 = vld [vmem:[%s1495 + $0x78] sm:$0xff]
        %1512 = vmatpush.msra.mxu0 %v1511
        %1513 = vmatpush.msra.mxu0 %v1510
        %1514 = vmatpush.msra.mxu0 %v1509
        %1515 = vmatpush.msra.mxu0 %v1508
        %1516 = vmatpush.msra.mxu0 %v1507
        %1517 = vmatpush.msra.mxu0 %v1506
        %1518 = vmatpush.msra.mxu0 %v1505
        %1519 = vmatpush.msra.mxu0 %v1504
        %1520 = vmatpush.msra.mxu0 %v1503
        %1521 = vmatpush.msra.mxu0 %v1502
        %1522 = vmatpush.msra.mxu0 %v1501
        %1523 = vmatpush.msra.mxu0 %v1500
        %1524 = vmatpush.msra.mxu0 %v1499
        %1525 = vmatpush.msra.mxu0 %v1498
        %1526 = vmatpush.msra.mxu0 %v1497
        %1527 = vmatpush.msra.mxu0 %v1496
        %1528 = vmatmul.f32.gmra.mxu0 %v1459
        %v1529 = vpop.f32.mrf.mxu0
        %v1530 = vadd.f32 0.0, %v1529
        %1531 = vmatmul.f32.gmra.mxu0 %v1460
        %v1532 = vpop.f32.mrf.mxu0
        %v1533 = vadd.f32 0.0, %v1532
        %1534 = vmatmul.f32.gmra.mxu0 %v1461
        %v1535 = vpop.f32.mrf.mxu0
        %v1536 = vadd.f32 0.0, %v1535
        %1537 = vmatmul.f32.gmra.mxu0 %v1462
        %v1538 = vpop.f32.mrf.mxu0
        %v1539 = vadd.f32 0.0, %v1538
        %1540 = vmatmul.f32.gmra.mxu0 %v1463
        %v1541 = vpop.f32.mrf.mxu0
        %v1542 = vadd.f32 0.0, %v1541
        %1543 = vmatmul.f32.gmra.mxu0 %v1464
        %v1544 = vpop.f32.mrf.mxu0
        %v1545 = vadd.f32 0.0, %v1544
        %1546 = vmatmul.f32.gmra.mxu0 %v1465
        %v1547 = vpop.f32.mrf.mxu0
        %v1548 = vadd.f32 0.0, %v1547
        %1549 = vmatmul.f32.gmra.mxu0 %v1466
        %v1550 = vpop.f32.mrf.mxu0
        %v1551 = vadd.f32 0.0, %v1550
        %1552 = vmatmul.f32.gmra.mxu0 %v1467
        %v1553 = vpop.f32.mrf.mxu0
        %v1554 = vadd.f32 0.0, %v1553
        %1555 = vmatmul.f32.gmra.mxu0 %v1468
        %v1556 = vpop.f32.mrf.mxu0
        %v1557 = vadd.f32 0.0, %v1556
        %1558 = vmatmul.f32.gmra.mxu0 %v1469
        %v1559 = vpop.f32.mrf.mxu0
        %v1560 = vadd.f32 0.0, %v1559
        %1561 = vmatmul.f32.gmra.mxu0 %v1470
        %v1562 = vpop.f32.mrf.mxu0
        %v1563 = vadd.f32 0.0, %v1562
        %1564 = vmatmul.f32.gmra.mxu0 %v1471
        %v1565 = vpop.f32.mrf.mxu0
        %v1566 = vadd.f32 0.0, %v1565
        %1567 = vmatmul.f32.gmra.mxu0 %v1472
        %v1568 = vpop.f32.mrf.mxu0
        %v1569 = vadd.f32 0.0, %v1568
        %1570 = vmatmul.f32.gmra.mxu0 %v1473
        %v1571 = vpop.f32.mrf.mxu0
        %v1572 = vadd.f32 0.0, %v1571
        %1573 = vmatmul.f32.gmra.mxu0 %v1474
        %v1574 = vpop.f32.mrf.mxu0
        %v1575 = vadd.f32 0.0, %v1574
        %1576 = vmatmul.f32.gmra.mxu0 %v1475
        %v1577 = vpop.f32.mrf.mxu0
        %v1578 = vadd.f32 0.0, %v1577
        %1579 = vmatmul.f32.gmra.mxu0 %v1476
        %v1580 = vpop.f32.mrf.mxu0
        %v1581 = vadd.f32 0.0, %v1580
        %1582 = vmatmul.f32.gmra.mxu0 %v1477
        %v1583 = vpop.f32.mrf.mxu0
        %v1584 = vadd.f32 0.0, %v1583
        %1585 = vmatmul.f32.gmra.mxu0 %v1478
        %v1586 = vpop.f32.mrf.mxu0
        %v1587 = vadd.f32 0.0, %v1586
        %1588 = vmatmul.f32.gmra.mxu0 %v1479
        %v1589 = vpop.f32.mrf.mxu0
        %v1590 = vadd.f32 0.0, %v1589
        %1591 = vmatmul.f32.gmra.mxu0 %v1480
        %v1592 = vpop.f32.mrf.mxu0
        %v1593 = vadd.f32 0.0, %v1592
        %1594 = vmatmul.f32.gmra.mxu0 %v1481
        %v1595 = vpop.f32.mrf.mxu0
        %v1596 = vadd.f32 0.0, %v1595
        %1597 = vmatmul.f32.gmra.mxu0 %v1482
        %v1598 = vpop.f32.mrf.mxu0
        %v1599 = vadd.f32 0.0, %v1598
        %1600 = vmatmul.f32.gmra.mxu0 %v1483
        %v1601 = vpop.f32.mrf.mxu0
        %v1602 = vadd.f32 0.0, %v1601
        %1603 = vmatmul.f32.gmra.mxu0 %v1484
        %v1604 = vpop.f32.mrf.mxu0
        %v1605 = vadd.f32 0.0, %v1604
        %1606 = vmatmul.f32.gmra.mxu0 %v1485
        %v1607 = vpop.f32.mrf.mxu0
        %v1608 = vadd.f32 0.0, %v1607
        %1609 = vmatmul.f32.gmra.mxu0 %v1486
        %v1610 = vpop.f32.mrf.mxu0
        %v1611 = vadd.f32 0.0, %v1610
        %1612 = vmatmul.f32.gmra.mxu0 %v1487
        %v1613 = vpop.f32.mrf.mxu0
        %v1614 = vadd.f32 0.0, %v1613
        %1615 = vmatmul.f32.gmra.mxu0 %v1488
        %v1616 = vpop.f32.mrf.mxu0
        %v1617 = vadd.f32 0.0, %v1616
        %1618 = vmatmul.f32.gmra.mxu0 %v1489
        %v1619 = vpop.f32.mrf.mxu0
        %v1620 = vadd.f32 0.0, %v1619
        %1621 = vmatmul.f32.gmra.mxu0 %v1490
        %v1622 = vpop.f32.mrf.mxu0
        %v1623 = vadd.f32 0.0, %v1622
        %1624 = vmatmul.f32.gmra.mxu0 %v1491
        %v1625 = vpop.f32.mrf.mxu0
        %v1626 = vadd.f32 0.0, %v1625
        %1627 = vmatmul.f32.gmra.mxu0 %v1492
        %v1628 = vpop.f32.mrf.mxu0
        %v1629 = vadd.f32 0.0, %v1628
        %1630 = vmatmul.f32.gmra.mxu0 %v1493
        %v1631 = vpop.f32.mrf.mxu0
        %v1632 = vadd.f32 0.0, %v1631
        %1633 = vmatmul.f32.gmra.mxu0 %v1494
        %v1634 = vpop.f32.mrf.mxu0
        %v1635 = vadd.f32 0.0, %v1634
        %1636 = vdwg.mxu0
        %v1637 = vadd.f32 %v1423, %v1530
        %v1638 = vadd.f32 %v1424, %v1533
        %v1639 = vadd.f32 %v1425, %v1536
        %v1640 = vadd.f32 %v1426, %v1539
        %v1641 = vadd.f32 %v1427, %v1542
        %v1642 = vadd.f32 %v1428, %v1545
        %v1643 = vadd.f32 %v1429, %v1548
        %v1644 = vadd.f32 %v1430, %v1551
        %v1645 = vadd.f32 %v1431, %v1554
        %v1646 = vadd.f32 %v1432, %v1557
        %v1647 = vadd.f32 %v1433, %v1560
        %v1648 = vadd.f32 %v1434, %v1563
        %v1649 = vadd.f32 %v1435, %v1566
        %v1650 = vadd.f32 %v1436, %v1569
        %v1651 = vadd.f32 %v1437, %v1572
        %v1652 = vadd.f32 %v1438, %v1575
        %v1653 = vadd.f32 %v1439, %v1578
        %v1654 = vadd.f32 %v1440, %v1581
        %v1655 = vadd.f32 %v1441, %v1584
        %v1656 = vadd.f32 %v1442, %v1587
        %v1657 = vadd.f32 %v1443, %v1590
        %v1658 = vadd.f32 %v1444, %v1593
        %v1659 = vadd.f32 %v1445, %v1596
        %v1660 = vadd.f32 %v1446, %v1599
        %v1661 = vadd.f32 %v1447, %v1602
        %v1662 = vadd.f32 %v1448, %v1605
        %v1663 = vadd.f32 %v1449, %v1608
        %v1664 = vadd.f32 %v1450, %v1611
        %v1665 = vadd.f32 %v1451, %v1614
        %v1666 = vadd.f32 %v1452, %v1617
        %v1667 = vadd.f32 %v1453, %v1620
        %v1668 = vadd.f32 %v1454, %v1623
        %v1669 = vadd.f32 %v1455, %v1626
        %v1670 = vadd.f32 %v1456, %v1629
        %v1671 = vadd.f32 %v1457, %v1632
        %v1672 = vadd.f32 %v1458, %v1635
        %v1673 = vld [vmem:[%s235 + $0x25] sm:$0xff]
        %v1674 = vld [vmem:[%s235 + $0x2d] sm:$0xff]
        %v1675 = vld [vmem:[%s235 + $0x35] sm:$0xff]
        %v1676 = vld [vmem:[%s235 + $0x3d] sm:$0xff]
        %v1677 = vld [vmem:[%s235 + $0x45] sm:$0xff]
        %v1678 = vld [vmem:[%s235 + $0x4d] sm:$0xff]
        %v1679 = vld [vmem:[%s235 + $0x55] sm:$0xff]
        %v1680 = vld [vmem:[%s235 + $0x5d] sm:$0xff]
        %v1681 = vld [vmem:[%s235 + $0x65] sm:$0xff]
        %v1682 = vld [vmem:[%s235 + $0x6d] sm:$0xff]
        %v1683 = vld [vmem:[%s235 + $0x75] sm:$0xff]
        %v1684 = vld [vmem:[%s235 + $0x7d] sm:$0xff]
        %v1685 = vld [vmem:[%s235 + $0x85] sm:$0xff]
        %v1686 = vld [vmem:[%s235 + $0x8d] sm:$0xff]
        %v1687 = vld [vmem:[%s235 + $0x95] sm:$0xff]
        %v1688 = vld [vmem:[%s235 + $0x9d] sm:$0xff]
        %v1689 = vld [vmem:[%s235 + $0xa5] sm:$0xff]
        %v1690 = vld [vmem:[%s235 + $0xad] sm:$0xff]
        %v1691 = vld [vmem:[%s235 + $0xb5] sm:$0xff]
        %v1692 = vld [vmem:[%s235 + $0xbd] sm:$0xff]
        %v1693 = vld [vmem:[%s235 + $0xc5] sm:$0xff]
        %v1694 = vld [vmem:[%s235 + $0xcd] sm:$0xff]
        %v1695 = vld [vmem:[%s235 + $0xd5] sm:$0xff]
        %v1696 = vld [vmem:[%s235 + $0xdd] sm:$0xff]
        %v1697 = vld [vmem:[%s235 + $0xe5] sm:$0xff]
        %v1698 = vld [vmem:[%s235 + $0xed] sm:$0xff]
        %v1699 = vld [vmem:[%s235 + $0xf5] sm:$0xff]
        %v1700 = vld [vmem:[%s235 + $0xfd] sm:$0xff]
        %v1701 = vld [vmem:[%s235 + $0x105] sm:$0xff]
        %v1702 = vld [vmem:[%s235 + $0x10d] sm:$0xff]
        %v1703 = vld [vmem:[%s235 + $0x115] sm:$0xff]
        %v1704 = vld [vmem:[%s235 + $0x11d] sm:$0xff]
        %v1705 = vld [vmem:[%s235 + $0x125] sm:$0xff]
        %v1706 = vld [vmem:[%s235 + $0x12d] sm:$0xff]
        %v1707 = vld [vmem:[%s235 + $0x135] sm:$0xff]
        %v1708 = vld [vmem:[%s235 + $0x13d] sm:$0xff]
        %s1709 = scalar_lea.vmem %s243, 896
        %v1710 = vld [vmem:[%s1709] sm:$0xff]
        %v1711 = vld [vmem:[%s1709 + $0x8] sm:$0xff]
        %v1712 = vld [vmem:[%s1709 + $0x10] sm:$0xff]
        %v1713 = vld [vmem:[%s1709 + $0x18] sm:$0xff]
        %v1714 = vld [vmem:[%s1709 + $0x20] sm:$0xff]
        %v1715 = vld [vmem:[%s1709 + $0x28] sm:$0xff]
        %v1716 = vld [vmem:[%s1709 + $0x30] sm:$0xff]
        %v1717 = vld [vmem:[%s1709 + $0x38] sm:$0xff]
        %v1718 = vld [vmem:[%s1709 + $0x40] sm:$0xff]
        %v1719 = vld [vmem:[%s1709 + $0x48] sm:$0xff]
        %v1720 = vld [vmem:[%s1709 + $0x50] sm:$0xff]
        %v1721 = vld [vmem:[%s1709 + $0x58] sm:$0xff]
        %v1722 = vld [vmem:[%s1709 + $0x60] sm:$0xff]
        %v1723 = vld [vmem:[%s1709 + $0x68] sm:$0xff]
        %v1724 = vld [vmem:[%s1709 + $0x70] sm:$0xff]
        %v1725 = vld [vmem:[%s1709 + $0x78] sm:$0xff]
        %1726 = vmatpush.msra.mxu0 %v1725
        %1727 = vmatpush.msra.mxu0 %v1724
        %1728 = vmatpush.msra.mxu0 %v1723
        %1729 = vmatpush.msra.mxu0 %v1722
        %1730 = vmatpush.msra.mxu0 %v1721
        %1731 = vmatpush.msra.mxu0 %v1720
        %1732 = vmatpush.msra.mxu0 %v1719
        %1733 = vmatpush.msra.mxu0 %v1718
        %1734 = vmatpush.msra.mxu0 %v1717
        %1735 = vmatpush.msra.mxu0 %v1716
        %1736 = vmatpush.msra.mxu0 %v1715
        %1737 = vmatpush.msra.mxu0 %v1714
        %1738 = vmatpush.msra.mxu0 %v1713
        %1739 = vmatpush.msra.mxu0 %v1712
        %1740 = vmatpush.msra.mxu0 %v1711
        %1741 = vmatpush.msra.mxu0 %v1710
        %1742 = vmatmul.f32.gmra.mxu0 %v1673
        %v1743 = vpop.f32.mrf.mxu0
        %v1744 = vadd.f32 0.0, %v1743
        %1745 = vmatmul.f32.gmra.mxu0 %v1674
        %v1746 = vpop.f32.mrf.mxu0
        %v1747 = vadd.f32 0.0, %v1746
        %1748 = vmatmul.f32.gmra.mxu0 %v1675
        %v1749 = vpop.f32.mrf.mxu0
        %v1750 = vadd.f32 0.0, %v1749
        %1751 = vmatmul.f32.gmra.mxu0 %v1676
        %v1752 = vpop.f32.mrf.mxu0
        %v1753 = vadd.f32 0.0, %v1752
        %1754 = vmatmul.f32.gmra.mxu0 %v1677
        %v1755 = vpop.f32.mrf.mxu0
        %v1756 = vadd.f32 0.0, %v1755
        %1757 = vmatmul.f32.gmra.mxu0 %v1678
        %v1758 = vpop.f32.mrf.mxu0
        %v1759 = vadd.f32 0.0, %v1758
        %1760 = vmatmul.f32.gmra.mxu0 %v1679
        %v1761 = vpop.f32.mrf.mxu0
        %v1762 = vadd.f32 0.0, %v1761
        %1763 = vmatmul.f32.gmra.mxu0 %v1680
        %v1764 = vpop.f32.mrf.mxu0
        %v1765 = vadd.f32 0.0, %v1764
        %1766 = vmatmul.f32.gmra.mxu0 %v1681
        %v1767 = vpop.f32.mrf.mxu0
        %v1768 = vadd.f32 0.0, %v1767
        %1769 = vmatmul.f32.gmra.mxu0 %v1682
        %v1770 = vpop.f32.mrf.mxu0
        %v1771 = vadd.f32 0.0, %v1770
        %1772 = vmatmul.f32.gmra.mxu0 %v1683
        %v1773 = vpop.f32.mrf.mxu0
        %v1774 = vadd.f32 0.0, %v1773
        %1775 = vmatmul.f32.gmra.mxu0 %v1684
        %v1776 = vpop.f32.mrf.mxu0
        %v1777 = vadd.f32 0.0, %v1776
        %1778 = vmatmul.f32.gmra.mxu0 %v1685
        %v1779 = vpop.f32.mrf.mxu0
        %v1780 = vadd.f32 0.0, %v1779
        %1781 = vmatmul.f32.gmra.mxu0 %v1686
        %v1782 = vpop.f32.mrf.mxu0
        %v1783 = vadd.f32 0.0, %v1782
        %1784 = vmatmul.f32.gmra.mxu0 %v1687
        %v1785 = vpop.f32.mrf.mxu0
        %v1786 = vadd.f32 0.0, %v1785
        %1787 = vmatmul.f32.gmra.mxu0 %v1688
        %v1788 = vpop.f32.mrf.mxu0
        %v1789 = vadd.f32 0.0, %v1788
        %1790 = vmatmul.f32.gmra.mxu0 %v1689
        %v1791 = vpop.f32.mrf.mxu0
        %v1792 = vadd.f32 0.0, %v1791
        %1793 = vmatmul.f32.gmra.mxu0 %v1690
        %v1794 = vpop.f32.mrf.mxu0
        %v1795 = vadd.f32 0.0, %v1794
        %1796 = vmatmul.f32.gmra.mxu0 %v1691
        %v1797 = vpop.f32.mrf.mxu0
        %v1798 = vadd.f32 0.0, %v1797
        %1799 = vmatmul.f32.gmra.mxu0 %v1692
        %v1800 = vpop.f32.mrf.mxu0
        %v1801 = vadd.f32 0.0, %v1800
        %1802 = vmatmul.f32.gmra.mxu0 %v1693
        %v1803 = vpop.f32.mrf.mxu0
        %v1804 = vadd.f32 0.0, %v1803
        %1805 = vmatmul.f32.gmra.mxu0 %v1694
        %v1806 = vpop.f32.mrf.mxu0
        %v1807 = vadd.f32 0.0, %v1806
        %1808 = vmatmul.f32.gmra.mxu0 %v1695
        %v1809 = vpop.f32.mrf.mxu0
        %v1810 = vadd.f32 0.0, %v1809
        %1811 = vmatmul.f32.gmra.mxu0 %v1696
        %v1812 = vpop.f32.mrf.mxu0
        %v1813 = vadd.f32 0.0, %v1812
        %1814 = vmatmul.f32.gmra.mxu0 %v1697
        %v1815 = vpop.f32.mrf.mxu0
        %v1816 = vadd.f32 0.0, %v1815
        %1817 = vmatmul.f32.gmra.mxu0 %v1698
        %v1818 = vpop.f32.mrf.mxu0
        %v1819 = vadd.f32 0.0, %v1818
        %1820 = vmatmul.f32.gmra.mxu0 %v1699
        %v1821 = vpop.f32.mrf.mxu0
        %v1822 = vadd.f32 0.0, %v1821
        %1823 = vmatmul.f32.gmra.mxu0 %v1700
        %v1824 = vpop.f32.mrf.mxu0
        %v1825 = vadd.f32 0.0, %v1824
        %1826 = vmatmul.f32.gmra.mxu0 %v1701
        %v1827 = vpop.f32.mrf.mxu0
        %v1828 = vadd.f32 0.0, %v1827
        %1829 = vmatmul.f32.gmra.mxu0 %v1702
        %v1830 = vpop.f32.mrf.mxu0
        %v1831 = vadd.f32 0.0, %v1830
        %1832 = vmatmul.f32.gmra.mxu0 %v1703
        %v1833 = vpop.f32.mrf.mxu0
        %v1834 = vadd.f32 0.0, %v1833
        %1835 = vmatmul.f32.gmra.mxu0 %v1704
        %v1836 = vpop.f32.mrf.mxu0
        %v1837 = vadd.f32 0.0, %v1836
        %1838 = vmatmul.f32.gmra.mxu0 %v1705
        %v1839 = vpop.f32.mrf.mxu0
        %v1840 = vadd.f32 0.0, %v1839
        %1841 = vmatmul.f32.gmra.mxu0 %v1706
        %v1842 = vpop.f32.mrf.mxu0
        %v1843 = vadd.f32 0.0, %v1842
        %1844 = vmatmul.f32.gmra.mxu0 %v1707
        %v1845 = vpop.f32.mrf.mxu0
        %v1846 = vadd.f32 0.0, %v1845
        %1847 = vmatmul.f32.gmra.mxu0 %v1708
        %v1848 = vpop.f32.mrf.mxu0
        %v1849 = vadd.f32 0.0, %v1848
        %1850 = vdwg.mxu0
        %v1851 = vadd.f32 %v1637, %v1744
        %v1852 = vadd.f32 %v1638, %v1747
        %v1853 = vadd.f32 %v1639, %v1750
        %v1854 = vadd.f32 %v1640, %v1753
        %v1855 = vadd.f32 %v1641, %v1756
        %v1856 = vadd.f32 %v1642, %v1759
        %v1857 = vadd.f32 %v1643, %v1762
        %v1858 = vadd.f32 %v1644, %v1765
        %v1859 = vadd.f32 %v1645, %v1768
        %v1860 = vadd.f32 %v1646, %v1771
        %v1861 = vadd.f32 %v1647, %v1774
        %v1862 = vadd.f32 %v1648, %v1777
        %v1863 = vadd.f32 %v1649, %v1780
        %v1864 = vadd.f32 %v1650, %v1783
        %v1865 = vadd.f32 %v1651, %v1786
        %v1866 = vadd.f32 %v1652, %v1789
        %v1867 = vadd.f32 %v1653, %v1792
        %v1868 = vadd.f32 %v1654, %v1795
        %v1869 = vadd.f32 %v1655, %v1798
        %v1870 = vadd.f32 %v1656, %v1801
        %v1871 = vadd.f32 %v1657, %v1804
        %v1872 = vadd.f32 %v1658, %v1807
        %v1873 = vadd.f32 %v1659, %v1810
        %v1874 = vadd.f32 %v1660, %v1813
        %v1875 = vadd.f32 %v1661, %v1816
        %v1876 = vadd.f32 %v1662, %v1819
        %v1877 = vadd.f32 %v1663, %v1822
        %v1878 = vadd.f32 %v1664, %v1825
        %v1879 = vadd.f32 %v1665, %v1828
        %v1880 = vadd.f32 %v1666, %v1831
        %v1881 = vadd.f32 %v1667, %v1834
        %v1882 = vadd.f32 %v1668, %v1837
        %v1883 = vadd.f32 %v1669, %v1840
        %v1884 = vadd.f32 %v1670, %v1843
        %v1885 = vadd.f32 %v1671, %v1846
        %v1886 = vadd.f32 %v1672, %v1849
        %v1887 = vld [vmem:[%s235 + $0x26] sm:$0xff]
        %v1888 = vld [vmem:[%s235 + $0x2e] sm:$0xff]
        %v1889 = vld [vmem:[%s235 + $0x36] sm:$0xff]
        %v1890 = vld [vmem:[%s235 + $0x3e] sm:$0xff]
        %v1891 = vld [vmem:[%s235 + $0x46] sm:$0xff]
        %v1892 = vld [vmem:[%s235 + $0x4e] sm:$0xff]
        %v1893 = vld [vmem:[%s235 + $0x56] sm:$0xff]
        %v1894 = vld [vmem:[%s235 + $0x5e] sm:$0xff]
        %v1895 = vld [vmem:[%s235 + $0x66] sm:$0xff]
        %v1896 = vld [vmem:[%s235 + $0x6e] sm:$0xff]
        %v1897 = vld [vmem:[%s235 + $0x76] sm:$0xff]
        %v1898 = vld [vmem:[%s235 + $0x7e] sm:$0xff]
        %v1899 = vld [vmem:[%s235 + $0x86] sm:$0xff]
        %v1900 = vld [vmem:[%s235 + $0x8e] sm:$0xff]
        %v1901 = vld [vmem:[%s235 + $0x96] sm:$0xff]
        %v1902 = vld [vmem:[%s235 + $0x9e] sm:$0xff]
        %v1903 = vld [vmem:[%s235 + $0xa6] sm:$0xff]
        %v1904 = vld [vmem:[%s235 + $0xae] sm:$0xff]
        %v1905 = vld [vmem:[%s235 + $0xb6] sm:$0xff]
        %v1906 = vld [vmem:[%s235 + $0xbe] sm:$0xff]
        %v1907 = vld [vmem:[%s235 + $0xc6] sm:$0xff]
        %v1908 = vld [vmem:[%s235 + $0xce] sm:$0xff]
        %v1909 = vld [vmem:[%s235 + $0xd6] sm:$0xff]
        %v1910 = vld [vmem:[%s235 + $0xde] sm:$0xff]
        %v1911 = vld [vmem:[%s235 + $0xe6] sm:$0xff]
        %v1912 = vld [vmem:[%s235 + $0xee] sm:$0xff]
        %v1913 = vld [vmem:[%s235 + $0xf6] sm:$0xff]
        %v1914 = vld [vmem:[%s235 + $0xfe] sm:$0xff]
        %v1915 = vld [vmem:[%s235 + $0x106] sm:$0xff]
        %v1916 = vld [vmem:[%s235 + $0x10e] sm:$0xff]
        %v1917 = vld [vmem:[%s235 + $0x116] sm:$0xff]
        %v1918 = vld [vmem:[%s235 + $0x11e] sm:$0xff]
        %v1919 = vld [vmem:[%s235 + $0x126] sm:$0xff]
        %v1920 = vld [vmem:[%s235 + $0x12e] sm:$0xff]
        %v1921 = vld [vmem:[%s235 + $0x136] sm:$0xff]
        %v1922 = vld [vmem:[%s235 + $0x13e] sm:$0xff]
        %s1923 = scalar_lea.vmem %s243, 1024
        %v1924 = vld [vmem:[%s1923] sm:$0xff]
        %v1925 = vld [vmem:[%s1923 + $0x8] sm:$0xff]
        %v1926 = vld [vmem:[%s1923 + $0x10] sm:$0xff]
        %v1927 = vld [vmem:[%s1923 + $0x18] sm:$0xff]
        %v1928 = vld [vmem:[%s1923 + $0x20] sm:$0xff]
        %v1929 = vld [vmem:[%s1923 + $0x28] sm:$0xff]
        %v1930 = vld [vmem:[%s1923 + $0x30] sm:$0xff]
        %v1931 = vld [vmem:[%s1923 + $0x38] sm:$0xff]
        %v1932 = vld [vmem:[%s1923 + $0x40] sm:$0xff]
        %v1933 = vld [vmem:[%s1923 + $0x48] sm:$0xff]
        %v1934 = vld [vmem:[%s1923 + $0x50] sm:$0xff]
        %v1935 = vld [vmem:[%s1923 + $0x58] sm:$0xff]
        %v1936 = vld [vmem:[%s1923 + $0x60] sm:$0xff]
        %v1937 = vld [vmem:[%s1923 + $0x68] sm:$0xff]
        %v1938 = vld [vmem:[%s1923 + $0x70] sm:$0xff]
        %v1939 = vld [vmem:[%s1923 + $0x78] sm:$0xff]
        %1940 = vmatpush.msra.mxu0 %v1939
        %1941 = vmatpush.msra.mxu0 %v1938
        %1942 = vmatpush.msra.mxu0 %v1937
        %1943 = vmatpush.msra.mxu0 %v1936
        %1944 = vmatpush.msra.mxu0 %v1935
        %1945 = vmatpush.msra.mxu0 %v1934
        %1946 = vmatpush.msra.mxu0 %v1933
        %1947 = vmatpush.msra.mxu0 %v1932
        %1948 = vmatpush.msra.mxu0 %v1931
        %1949 = vmatpush.msra.mxu0 %v1930
        %1950 = vmatpush.msra.mxu0 %v1929
        %1951 = vmatpush.msra.mxu0 %v1928
        %1952 = vmatpush.msra.mxu0 %v1927
        %1953 = vmatpush.msra.mxu0 %v1926
        %1954 = vmatpush.msra.mxu0 %v1925
        %1955 = vmatpush.msra.mxu0 %v1924
        %1956 = vmatmul.f32.gmra.mxu0 %v1887
        %v1957 = vpop.f32.mrf.mxu0
        %v1958 = vadd.f32 0.0, %v1957
        %1959 = vmatmul.f32.gmra.mxu0 %v1888
        %v1960 = vpop.f32.mrf.mxu0
        %v1961 = vadd.f32 0.0, %v1960
        %1962 = vmatmul.f32.gmra.mxu0 %v1889
        %v1963 = vpop.f32.mrf.mxu0
        %v1964 = vadd.f32 0.0, %v1963
        %1965 = vmatmul.f32.gmra.mxu0 %v1890
        %v1966 = vpop.f32.mrf.mxu0
        %v1967 = vadd.f32 0.0, %v1966
        %1968 = vmatmul.f32.gmra.mxu0 %v1891
        %v1969 = vpop.f32.mrf.mxu0
        %v1970 = vadd.f32 0.0, %v1969
        %1971 = vmatmul.f32.gmra.mxu0 %v1892
        %v1972 = vpop.f32.mrf.mxu0
        %v1973 = vadd.f32 0.0, %v1972
        %1974 = vmatmul.f32.gmra.mxu0 %v1893
        %v1975 = vpop.f32.mrf.mxu0
        %v1976 = vadd.f32 0.0, %v1975
        %1977 = vmatmul.f32.gmra.mxu0 %v1894
        %v1978 = vpop.f32.mrf.mxu0
        %v1979 = vadd.f32 0.0, %v1978
        %1980 = vmatmul.f32.gmra.mxu0 %v1895
        %v1981 = vpop.f32.mrf.mxu0
        %v1982 = vadd.f32 0.0, %v1981
        %1983 = vmatmul.f32.gmra.mxu0 %v1896
        %v1984 = vpop.f32.mrf.mxu0
        %v1985 = vadd.f32 0.0, %v1984
        %1986 = vmatmul.f32.gmra.mxu0 %v1897
        %v1987 = vpop.f32.mrf.mxu0
        %v1988 = vadd.f32 0.0, %v1987
        %1989 = vmatmul.f32.gmra.mxu0 %v1898
        %v1990 = vpop.f32.mrf.mxu0
        %v1991 = vadd.f32 0.0, %v1990
        %1992 = vmatmul.f32.gmra.mxu0 %v1899
        %v1993 = vpop.f32.mrf.mxu0
        %v1994 = vadd.f32 0.0, %v1993
        %1995 = vmatmul.f32.gmra.mxu0 %v1900
        %v1996 = vpop.f32.mrf.mxu0
        %v1997 = vadd.f32 0.0, %v1996
        %1998 = vmatmul.f32.gmra.mxu0 %v1901
        %v1999 = vpop.f32.mrf.mxu0
        %v2000 = vadd.f32 0.0, %v1999
        %2001 = vmatmul.f32.gmra.mxu0 %v1902
        %v2002 = vpop.f32.mrf.mxu0
        %v2003 = vadd.f32 0.0, %v2002
        %2004 = vmatmul.f32.gmra.mxu0 %v1903
        %v2005 = vpop.f32.mrf.mxu0
        %v2006 = vadd.f32 0.0, %v2005
        %2007 = vmatmul.f32.gmra.mxu0 %v1904
        %v2008 = vpop.f32.mrf.mxu0
        %v2009 = vadd.f32 0.0, %v2008
        %2010 = vmatmul.f32.gmra.mxu0 %v1905
        %v2011 = vpop.f32.mrf.mxu0
        %v2012 = vadd.f32 0.0, %v2011
        %2013 = vmatmul.f32.gmra.mxu0 %v1906
        %v2014 = vpop.f32.mrf.mxu0
        %v2015 = vadd.f32 0.0, %v2014
        %2016 = vmatmul.f32.gmra.mxu0 %v1907
        %v2017 = vpop.f32.mrf.mxu0
        %v2018 = vadd.f32 0.0, %v2017
        %2019 = vmatmul.f32.gmra.mxu0 %v1908
        %v2020 = vpop.f32.mrf.mxu0
        %v2021 = vadd.f32 0.0, %v2020
        %2022 = vmatmul.f32.gmra.mxu0 %v1909
        %v2023 = vpop.f32.mrf.mxu0
        %v2024 = vadd.f32 0.0, %v2023
        %2025 = vmatmul.f32.gmra.mxu0 %v1910
        %v2026 = vpop.f32.mrf.mxu0
        %v2027 = vadd.f32 0.0, %v2026
        %2028 = vmatmul.f32.gmra.mxu0 %v1911
        %v2029 = vpop.f32.mrf.mxu0
        %v2030 = vadd.f32 0.0, %v2029
        %2031 = vmatmul.f32.gmra.mxu0 %v1912
        %v2032 = vpop.f32.mrf.mxu0
        %v2033 = vadd.f32 0.0, %v2032
        %2034 = vmatmul.f32.gmra.mxu0 %v1913
        %v2035 = vpop.f32.mrf.mxu0
        %v2036 = vadd.f32 0.0, %v2035
        %2037 = vmatmul.f32.gmra.mxu0 %v1914
        %v2038 = vpop.f32.mrf.mxu0
        %v2039 = vadd.f32 0.0, %v2038
        %2040 = vmatmul.f32.gmra.mxu0 %v1915
        %v2041 = vpop.f32.mrf.mxu0
        %v2042 = vadd.f32 0.0, %v2041
        %2043 = vmatmul.f32.gmra.mxu0 %v1916
        %v2044 = vpop.f32.mrf.mxu0
        %v2045 = vadd.f32 0.0, %v2044
        %2046 = vmatmul.f32.gmra.mxu0 %v1917
        %v2047 = vpop.f32.mrf.mxu0
        %v2048 = vadd.f32 0.0, %v2047
        %2049 = vmatmul.f32.gmra.mxu0 %v1918
        %v2050 = vpop.f32.mrf.mxu0
        %v2051 = vadd.f32 0.0, %v2050
        %2052 = vmatmul.f32.gmra.mxu0 %v1919
        %v2053 = vpop.f32.mrf.mxu0
        %v2054 = vadd.f32 0.0, %v2053
        %2055 = vmatmul.f32.gmra.mxu0 %v1920
        %v2056 = vpop.f32.mrf.mxu0
        %v2057 = vadd.f32 0.0, %v2056
        %2058 = vmatmul.f32.gmra.mxu0 %v1921
        %v2059 = vpop.f32.mrf.mxu0
        %v2060 = vadd.f32 0.0, %v2059
        %2061 = vmatmul.f32.gmra.mxu0 %v1922
        %v2062 = vpop.f32.mrf.mxu0
        %v2063 = vadd.f32 0.0, %v2062
        %2064 = vdwg.mxu0
        %v2065 = vadd.f32 %v1851, %v1958
        %v2066 = vadd.f32 %v1852, %v1961
        %v2067 = vadd.f32 %v1853, %v1964
        %v2068 = vadd.f32 %v1854, %v1967
        %v2069 = vadd.f32 %v1855, %v1970
        %v2070 = vadd.f32 %v1856, %v1973
        %v2071 = vadd.f32 %v1857, %v1976
        %v2072 = vadd.f32 %v1858, %v1979
        %v2073 = vadd.f32 %v1859, %v1982
        %v2074 = vadd.f32 %v1860, %v1985
        %v2075 = vadd.f32 %v1861, %v1988
        %v2076 = vadd.f32 %v1862, %v1991
        %v2077 = vadd.f32 %v1863, %v1994
        %v2078 = vadd.f32 %v1864, %v1997
        %v2079 = vadd.f32 %v1865, %v2000
        %v2080 = vadd.f32 %v1866, %v2003
        %v2081 = vadd.f32 %v1867, %v2006
        %v2082 = vadd.f32 %v1868, %v2009
        %v2083 = vadd.f32 %v1869, %v2012
        %v2084 = vadd.f32 %v1870, %v2015
        %v2085 = vadd.f32 %v1871, %v2018
        %v2086 = vadd.f32 %v1872, %v2021
        %v2087 = vadd.f32 %v1873, %v2024
        %v2088 = vadd.f32 %v1874, %v2027
        %v2089 = vadd.f32 %v1875, %v2030
        %v2090 = vadd.f32 %v1876, %v2033
        %v2091 = vadd.f32 %v1877, %v2036
        %v2092 = vadd.f32 %v1878, %v2039
        %v2093 = vadd.f32 %v1879, %v2042
        %v2094 = vadd.f32 %v1880, %v2045
        %v2095 = vadd.f32 %v1881, %v2048
        %v2096 = vadd.f32 %v1882, %v2051
        %v2097 = vadd.f32 %v1883, %v2054
        %v2098 = vadd.f32 %v1884, %v2057
        %v2099 = vadd.f32 %v1885, %v2060
        %v2100 = vadd.f32 %v1886, %v2063
        %v2101 = vld [vmem:[%s247] sm:$0x1]
        %v2103 = vperm.slane %v2101, 0
        %v2105 = vadd.f32 %v2065, %v2103
        %v2106 = vadd.f32 %v2066, %v2103
        %v2107 = vadd.f32 %v2067, %v2103
        %v2108 = vadd.f32 %v2068, %v2103
        %v2109 = vadd.f32 %v2069, %v2103
        %v2110 = vadd.f32 %v2070, %v2103
        %v2111 = vadd.f32 %v2071, %v2103
        %v2112 = vadd.f32 %v2072, %v2103
        %v2113 = vadd.f32 %v2073, %v2103
        %v2114 = vadd.f32 %v2074, %v2103
        %v2115 = vadd.f32 %v2075, %v2103
        %v2116 = vadd.f32 %v2076, %v2103
        %v2117 = vadd.f32 %v2077, %v2103
        %v2118 = vadd.f32 %v2078, %v2103
        %v2119 = vadd.f32 %v2079, %v2103
        %v2120 = vadd.f32 %v2080, %v2103
        %v2121 = vadd.f32 %v2081, %v2103
        %v2122 = vadd.f32 %v2082, %v2103
        %v2123 = vadd.f32 %v2083, %v2103
        %v2124 = vadd.f32 %v2084, %v2103
        %v2125 = vadd.f32 %v2085, %v2103
        %v2126 = vadd.f32 %v2086, %v2103
        %v2127 = vadd.f32 %v2087, %v2103
        %v2128 = vadd.f32 %v2088, %v2103
        %v2129 = vadd.f32 %v2089, %v2103
        %v2130 = vadd.f32 %v2090, %v2103
        %v2131 = vadd.f32 %v2091, %v2103
        %v2132 = vadd.f32 %v2092, %v2103
        %v2133 = vadd.f32 %v2093, %v2103
        %v2134 = vadd.f32 %v2094, %v2103
        %v2135 = vadd.f32 %v2095, %v2103
        %v2136 = vadd.f32 %v2096, %v2103
        %v2137 = vadd.f32 %v2097, %v2103
        %v2138 = vadd.f32 %v2098, %v2103
        %v2139 = vadd.f32 %v2099, %v2103
        %v2140 = vadd.f32 %v2100, %v2103
        %v2141 = vmax.f32 %v2105, 0.0
        %v2142 = vmax.f32 %v2106, 0.0
        %v2143 = vmax.f32 %v2107, 0.0
        %v2144 = vmax.f32 %v2108, 0.0
        %v2145 = vmax.f32 %v2109, 0.0
        %v2146 = vmax.f32 %v2110, 0.0
        %v2147 = vmax.f32 %v2111, 0.0
        %v2148 = vmax.f32 %v2112, 0.0
        %v2149 = vmax.f32 %v2113, 0.0
        %v2150 = vmax.f32 %v2114, 0.0
        %v2151 = vmax.f32 %v2115, 0.0
        %v2152 = vmax.f32 %v2116, 0.0
        %v2153 = vmax.f32 %v2117, 0.0
        %v2154 = vmax.f32 %v2118, 0.0
        %v2155 = vmax.f32 %v2119, 0.0
        %v2156 = vmax.f32 %v2120, 0.0
        %v2157 = vmax.f32 %v2121, 0.0
        %v2158 = vmax.f32 %v2122, 0.0
        %v2159 = vmax.f32 %v2123, 0.0
        %v2160 = vmax.f32 %v2124, 0.0
        %v2161 = vmax.f32 %v2125, 0.0
        %v2162 = vmax.f32 %v2126, 0.0
        %v2163 = vmax.f32 %v2127, 0.0
        %v2164 = vmax.f32 %v2128, 0.0
        %v2165 = vmax.f32 %v2129, 0.0
        %v2166 = vmax.f32 %v2130, 0.0
        %v2167 = vmax.f32 %v2131, 0.0
        %v2168 = vmax.f32 %v2132, 0.0
        %v2169 = vmax.f32 %v2133, 0.0
        %v2170 = vmax.f32 %v2134, 0.0
        %v2171 = vmax.f32 %v2135, 0.0
        %v2172 = vmax.f32 %v2136, 0.0
        %v2173 = vmax.f32 %v2137, 0.0
        %v2174 = vmax.f32 %v2138, 0.0
        %v2175 = vmax.f32 %v2139, 0.0
        %v2176 = vmax.f32 %v2140, 0.0
        %2177 = vst [vmem:[%s227] sm:$0xff] %v2141
        %2178 = vst [vmem:[%s227 + $0x8] sm:$0xff] %v2142
        %2179 = vst [vmem:[%s227 + $0x10] sm:$0xff] %v2143
        %2180 = vst [vmem:[%s227 + $0x18] sm:$0xff] %v2144
        %2181 = vst [vmem:[%s227 + $0x20] sm:$0xff] %v2145
        %2182 = vst [vmem:[%s227 + $0x28] sm:$0xff] %v2146
        %2183 = vst [vmem:[%s227 + $0x30] sm:$0xff] %v2147
        %2184 = vst [vmem:[%s227 + $0x38] sm:$0xff] %v2148
        %2185 = vst [vmem:[%s227 + $0x40] sm:$0xff] %v2149
        %2186 = vst [vmem:[%s227 + $0x48] sm:$0xff] %v2150
        %2187 = vst [vmem:[%s227 + $0x50] sm:$0xff] %v2151
        %2188 = vst [vmem:[%s227 + $0x58] sm:$0xff] %v2152
        %2189 = vst [vmem:[%s227 + $0x60] sm:$0xff] %v2153
        %2190 = vst [vmem:[%s227 + $0x68] sm:$0xff] %v2154
        %2191 = vst [vmem:[%s227 + $0x70] sm:$0xff] %v2155
        %2192 = vst [vmem:[%s227 + $0x78] sm:$0xff] %v2156
        %2193 = vst [vmem:[%s227 + $0x80] sm:$0xff] %v2157
        %2194 = vst [vmem:[%s227 + $0x88] sm:$0xff] %v2158
        %2195 = vst [vmem:[%s227 + $0x90] sm:$0xff] %v2159
        %2196 = vst [vmem:[%s227 + $0x98] sm:$0xff] %v2160
        %2197 = vst [vmem:[%s227 + $0xa0] sm:$0xff] %v2161
        %2198 = vst [vmem:[%s227 + $0xa8] sm:$0xff] %v2162
        %2199 = vst [vmem:[%s227 + $0xb0] sm:$0xff] %v2163
        %2200 = vst [vmem:[%s227 + $0xb8] sm:$0xff] %v2164
        %2201 = vst [vmem:[%s227 + $0xc0] sm:$0xff] %v2165
        %2202 = vst [vmem:[%s227 + $0xc8] sm:$0xff] %v2166
        %2203 = vst [vmem:[%s227 + $0xd0] sm:$0xff] %v2167
        %2204 = vst [vmem:[%s227 + $0xd8] sm:$0xff] %v2168
        %2205 = vst [vmem:[%s227 + $0xe0] sm:$0xff] %v2169
        %2206 = vst [vmem:[%s227 + $0xe8] sm:$0xff] %v2170
        %2207 = vst [vmem:[%s227 + $0xf0] sm:$0xff] %v2171
        %2208 = vst [vmem:[%s227 + $0xf8] sm:$0xff] %v2172
        %2209 = vst [vmem:[%s227 + $0x100] sm:$0xff] %v2173
        %2210 = vst [vmem:[%s227 + $0x108] sm:$0xff] %v2174
        %2211 = vst [vmem:[%s227 + $0x110] sm:$0xff] %v2175
        %2212 = vst [vmem:[%s227 + $0x118] sm:$0xff] %v2176
        %s2213 = sand.u32 %s128, 1
        %s2214 = scalar_lea.sflag [#allocation3], %s2213
        %s2215 = sand.u32 %s128, 1
        %s2216 = smul.addr %s2215, 288
        %s2217 = scalar_lea.vmem [#allocation2], %s2216
        // Predicated region
        $region33: #{tpu_custom_call.1} parent=31 // pred_check
          %p2218 = pneg %p138
        $region34: #{tpu_custom_call.1} parent=31 // pred_check_branch
          %2220 = sbr.rel (%p2218) target = $region36
        $region35: #{tpu_custom_call.1} parent=31 // pred_region
          %2222 = vsyncadd %s2214, 0
          %s2223 = smul.addr %s22, 36
          %s2224 = sadd.s32 %s23, %s2223
          %s2225 = smul.addr %s2224, 8
          %s2226 = scalar_lea.hbm %s3, %s2225
          %s2227 = sshll.u32 %s2217, 4
          %s2228 = int_to_ptr.vmem [resolvable:$true] %s2227
          %s2229 = sshll.u32 %s2226, 4
          %s2230 = int_to_ptr.hbm [resolvable:$true] %s2229
          %2235 = dma.vmem_to_hbm [thread:$0]  %s2228, 4608, %s2230, %s2214, 128, 128, 8
        $region36: #{tpu_custom_call.1} parent=31 // pred_fallthru
          _
      $region32: #{tpu_custom_call.1} parent=5 // pred_fallthru
        _
      %p2236 = scmp.le.s32.totalorder 2, %s12
      // Predicated region
      $region37: #{tpu_custom_call.1} parent=5 // pred_check
        %p2237 = pneg %p2236
      $region38: #{tpu_custom_call.1} parent=5 // pred_check_branch
        %2239 = sbr.rel (%p2237) target = $region40
      $region39: #{tpu_custom_call.1} parent=5 // pred_region
        %s2240 = ssub.s32 %s12, 2
        // Predicated region
        $region41: #{tpu_custom_call.1} parent=39 // pred_check
          %p2241 = pneg %p144
        $region42: #{tpu_custom_call.1} parent=39 // pred_check_branch
          %2243 = sbr.rel (%p2241) target = $region44
        $region43: #{tpu_custom_call.1} parent=39 // pred_region
          %s2244 = sand.u32 %s129, 1
          %s2245 = scalar_lea.sflag [#allocation3], %s2244
          %s2246 = sand.u32 %s129, 1
          %s2247 = smul.addr %s2246, 288
          %s2248 = scalar_lea.vmem [#allocation2], %s2247
          %2250 = dma.done %s2245, 4608
        $region44: #{tpu_custom_call.1} parent=39 // pred_fallthru
          _
      $region40: #{tpu_custom_call.1} parent=5 // pred_fallthru
        _
    $region6: #{tpu_custom_call.1} parent=1 // loop_footer
      %s16 = sadd.s32 1, %s12
    $region7: #{tpu_custom_call.1} parent=1 // loop_footer_branch
      %11 = sbr.rel target = $region3
    $region8: #{tpu_custom_call.1} parent=1 // loop_exit
      _
    %2251 = vsyncpa [#allocation3], 1
    %s2252 = scalar_lea.sflag [#allocation3], 1
    %2253 = vsyncpa %s2252, 1

</llo_original>
